<compile_context>
chip_gen: v5e
topology: v5e:2x2
jax: 0.10.0
libtpu: 0.0.40
codegen_flags: <defaults>
</compile_context>

<pallas_src>
import functools

import jax
import jax.numpy as jnp
from jax.experimental import pallas as pl
from jax.experimental.pallas import tpu as pltpu

_BN_EPS = 1e-5
_PAD_ROWS = 8   # aligned zero-padding block (multiple of the 8-sublane f32 tile)


# ----------------------------------------------------------------------------
# Fused whole-network Pallas kernel
# ----------------------------------------------------------------------------
def _fused_tcn_kernel(*refs, plan, B, T):
    """refs = (x_ref, [per block: w1, s1, w2, s2, (dsw, dss)?], head_w, head_b, out_ref)."""
    out_ref = refs[-1]
    it = iter(refs[:-1])
    x_ref = next(it)

    # Flatten batch onto the sublane axis: (B, T, Cin) -> (B*T, Cin).
    x2d = jnp.concatenate([x_ref[b] for b in range(B)], axis=0).astype(jnp.float32)

    for blk in plan:
        d, K = blk["dilation"], blk["K"]
        w1, s1 = next(it), next(it)
        w2, s2 = next(it), next(it)

        if blk["has_downsample"]:
            dsw, dss = next(it), next(it)
            residual = (jnp.dot(x2d, dsw[...], preferred_element_type=jnp.float32)
                        + dss[...])
        else:
            residual = x2d

        y2d = x2d
        for w_ref, s_ref in ((w1, s1), (w2, s2)):
            ci = y2d.shape[-1]
            cout = w_ref.shape[-1]
            pad = (K - 1) * d // 2          # centered "same" padding (== symmetric Chomp1d)
            z = jnp.zeros((_PAD_ROWS, ci), jnp.float32)
            # Pad each batch element's time axis in VMEM with aligned 8-row zero blocks.
            padded = [jnp.concatenate([z, y2d[b * T:(b + 1) * T, :], z], axis=0)
                      for b in range(B)]    # each (T + 2*_PAD_ROWS, ci)
            acc = jnp.zeros((B * T, cout), jnp.float32)
            # Per-tap MXU accumulation against fused (branch-concatenated, BN-folded) weights.
            for j in range(K):
                off = _PAD_ROWS - pad + j * d
                win = jnp.concatenate([p[off:off + T, :] for p in padded], axis=0)
                acc = acc + jnp.dot(win, w_ref[j], preferred_element_type=jnp.float32)
            y2d = jnp.maximum(acc + s_ref[...], 0.0)
            # dropout: eval mode -> identity
        x2d = jnp.maximum(y2d + residual, 0.0)             # final_act(y + residual)

    # Both Linear heads fused into one matmul (weights concatenated along classes).
    head_w, head_b = next(it), next(it)
    out = jnp.dot(x2d, head_w[...], preferred_element_type=jnp.float32) + head_b[...]
    for b in range(B):
        out_ref[b] = out[b * T:(b + 1) * T, :].astype(out_ref.dtype)


def _full_spec(arr):
    nd = arr.ndim
    return pl.BlockSpec(arr.shape, lambda i, _nd=nd: (0,) * _nd)


def tcn_forward_pallas(x_bct, fused, length=None):
    """x_bct: (B, C_in, T) as in PyTorch.  Returns (out_place, length, out_phone)."""
    B, _, T = x_bct.shape
    x_btc = jnp.transpose(x_bct, (0, 2, 1)).astype(jnp.float32)
    inputs = [x_btc] + list(fused["flat"])
    c_place, c_phone = fused["num_classes"]
    c_heads = c_place + c_phone

    kernel = functools.partial(_fused_tcn_kernel, plan=fused["plan"], B=B, T=T)
    out = pl.pallas_call(
        kernel,
        out_shape=jax.ShapeDtypeStruct((B, T, c_heads), jnp.float32),
        grid=(1,),                                   # whole network in one grid step
        in_specs=[_full_spec(a) for a in inputs],
        out_specs=pl.BlockSpec((B, T, c_heads), lambda i: (0, 0, 0)),
        compiler_params=pltpu.CompilerParams(dimension_semantics=("arbitrary",)),
    )(*inputs)
    return out[..., :c_place], length, out[..., c_place:]


# ----------------------------------------------------------------------------
# Parameters (deterministic synthetic init, BN folded) and fusion prep
# ----------------------------------------------------------------------------
def _conv_branch_params(key, cin, cout, k, *, with_bias=True):
    k1, k2, k3, k4, k5, k6 = jax.random.split(key, 6)
    w = 0.1 * jax.random.normal(k1, (k, cin, cout), jnp.float32)
    bias = (0.1 * jax.random.normal(k2, (cout,), jnp.float32)
            if with_bias else jnp.zeros((cout,), jnp.float32))
    gamma = 1.0 + 0.1 * jax.random.normal(k3, (cout,), jnp.float32)
    beta = 0.1 * jax.random.normal(k4, (cout,), jnp.float32)
    mean = 0.1 * jax.random.normal(k5, (cout,), jnp.float32)
    var = 1.0 + 0.1 * jnp.abs(jax.random.normal(k6, (cout,), jnp.float32))
    scale = gamma / jnp.sqrt(var + _BN_EPS)
    shift = beta + scale * (bias - mean)
    return {"w": w, "scale": scale.reshape(1, cout), "shift": shift.reshape(1, cout)}


def make_params(key, in_channels, hidden_channels, kernel_sizes, num_classes):
    nb = len(kernel_sizes)
    params = {"blocks": []}
    keys = jax.random.split(key, len(hidden_channels) + 1)
    cin = in_channels
    for bi, cout in enumerate(hidden_channels):
        assert cout % nb == 0
        branch_out = cout // nb
        block = {"dilation": 2 ** bi, "convs": []}
        ck = jax.random.split(keys[bi], 2 * nb + 1)
        idx = 0
        for ci in range(2):                              # conv_num = 2
            layer_in = cin if ci == 0 else cout
            layer = []
            for k in kernel_sizes:
                layer.append(_conv_branch_params(ck[idx], layer_in, branch_out, k))
                idx += 1
            block["convs"].append(layer)
        if cin // nb != cout:                            # stride == 1 always here
            # TODO(synk): DownSample1d source not provided; assumed 1x1 Conv1d(bias=False)
            # + BatchNorm1d ('norm' downsample_type).
            block["downsample"] = _conv_branch_params(ck[idx], cin, cout, 1, with_bias=False)
        params["blocks"].append(block)
        cin = cout
    k1, k2, k3, k4 = jax.random.split(keys[-1], 4)
    H = hidden_channels[-1]
    params["place_w"] = 0.1 * jax.random.normal(k1, (H, num_classes[0]), jnp.float32)
    params["place_b"] = 0.1 * jax.random.normal(k2, (num_classes[0],), jnp.float32)
    params["phone_w"] = 0.1 * jax.random.normal(k3, (H, num_classes[1]), jnp.float32)
    params["phone_b"] = 0.1 * jax.random.normal(k4, (num_classes[1],), jnp.float32)
    return params


def fuse_params(params, in_channels, hidden_channels, kernel_sizes, num_classes):
    """Fold BN scale into weights, center-embed small kernels into K_max taps, concat
    branches along Cout, and concat the two Linear heads along the class dim."""
    K_max = max(kernel_sizes)
    assert all(k % 2 == 1 for k in kernel_sizes), "centered 'same' conv requires odd kernels"
    plan, flat = [], []
    cin = in_channels
    for bi, block in enumerate(params["blocks"]):
        d = block["dilation"]
        cout = hidden_channels[bi]
        for li, layer in enumerate(block["convs"]):
            layer_in = cin if li == 0 else cout
            ws, shifts = [], []
            for p, k in zip(layer, kernel_sizes):
                w = p["w"] * p["scale"][0][None, None, :]      # fold BN scale into weights
                off = (K_max - k) // 2                         # center-embed k taps in K_max
                w_pad = jnp.zeros((K_max, layer_in, w.shape[-1]), jnp.float32)
                w_pad = w_pad.at[off:off + k].set(w)
                ws.append(w_pad)
                shifts.append(p["shift"])
            flat.append(jnp.concatenate(ws, axis=-1))          # (K_max, layer_in, cout)
            flat.append(jnp.concatenate(shifts, axis=-1))      # (1, cout)
        has_ds = "downsample" in block
        if has_ds:
            ds = block["downsample"]
            flat.append(ds["w"][0] * ds["scale"][0][None, :])  # (cin, cout), scale folded
            flat.append(ds["shift"])                           # (1, cout)
        plan.append({"dilation": d, "K": K_max, "has_downsample": has_ds})
        cin = cout
    flat.append(jnp.concatenate([params["place_w"], params["phone_w"]], axis=-1))  # (H, C1+C2)
    flat.append(jnp.concatenate([params["place_b"], params["phone_b"]]).reshape(1, -1))
    return {"plan": tuple(plan), "flat": flat, "num_classes": tuple(num_classes)}


# ----------------------------------------------------------------------------
# Pure-JAX reference (independent check of the fused Pallas kernel)
# ----------------------------------------------------------------------------
def _conv_bn_relu_ref(x_btc, w, scale, shift, *, dilation, act):
    K = w.shape[0]
    pad = (K - 1) * dilation // 2
    x_bct = jnp.transpose(x_btc, (0, 2, 1))
    w_oik = jnp.transpose(w, (2, 1, 0))                        # (Cout, Cin, K)
    y = jax.lax.conv_general_dilated(
        x_bct, w_oik, window_strides=(1,), padding=[(pad, pad)],
        rhs_dilation=(dilation,), dimension_numbers=("NCH", "OIH", "NCH"))
    y = y * scale[0][None, :, None] + shift[0][None, :, None]
    if act:
        y = jnp.maximum(y, 0.0)
    return jnp.transpose(y, (0, 2, 1))


def model_forward_ref(x_bct, params):
    x = jnp.transpose(x_bct, (0, 2, 1)).astype(jnp.float32)    # (B, T, Cin)
    for block in params["blocks"]:
        d = block["dilation"]
        if "downsample" in block:
            ds = block["downsample"]
            residual = _conv_bn_relu_ref(x, ds["w"], ds["scale"], ds["shift"],
                                         dilation=1, act=False)
        else:
            residual = x
        y = x
        for layer in block["convs"]:
            y = jnp.concatenate(
                [_conv_bn_relu_ref(y, p["w"], p["scale"], p["shift"], dilation=d, act=True)
                 for p in layer], axis=-1)
        x = jnp.maximum(y + residual, 0.0)
    out_place = x @ params["place_w"] + params["place_b"]
    out_phone = x @ params["phone_w"] + params["phone_b"]
    return out_place, out_phone


# ----------------------------------------------------------------------------
if __name__ == "__main__":
    key = jax.random.PRNGKey(0)
    kx, kp = jax.random.split(key)

    B, Cin, T = 2, 8, 16
    hidden_channels = [16, 16]
    kernel_sizes = [3, 5]
    num_classes = [5, 7]

    x = jax.random.normal(kx, (B, Cin, T), jnp.float32)        # PyTorch NCT input
    params = make_params(kp, Cin, hidden_channels, kernel_sizes, num_classes)
    fused = fuse_params(params, Cin, hidden_channels, kernel_sizes, num_classes)

    out_place, length, out_phone = tcn_forward_pallas(x, fused)
    out_place = jax.block_until_ready(out_place)
    out_phone = jax.block_until_ready(out_phone)

    assert out_place.shape == (B, T, num_classes[0])
    assert out_phone.shape == (B, T, num_classes[1])
    assert length is None

    ref_place, ref_phone = model_forward_ref(x, params)
    assert jnp.allclose(out_place, ref_place, atol=1e-4, rtol=1e-4)
    assert jnp.allclose(out_phone, ref_phone, atol=1e-4, rtol=1e-4)

    print("KERNEL_OK")
</pallas_src>

<mosaic_0001>
module attributes {stable_mosaic.version = 11 : i64} {
  func.func @_fused_tcn_kernel(%arg0: i32, %arg1: memref<2x16x8xf32, #tpu.memory_space<vmem>>, %arg2: memref<5x8x16xf32, #tpu.memory_space<vmem>>, %arg3: memref<1x16xf32, #tpu.memory_space<vmem>>, %arg4: memref<5x16x16xf32, #tpu.memory_space<vmem>>, %arg5: memref<1x16xf32, #tpu.memory_space<vmem>>, %arg6: memref<8x16xf32, #tpu.memory_space<vmem>>, %arg7: memref<1x16xf32, #tpu.memory_space<vmem>>, %arg8: memref<5x16x16xf32, #tpu.memory_space<vmem>>, %arg9: memref<1x16xf32, #tpu.memory_space<vmem>>, %arg10: memref<5x16x16xf32, #tpu.memory_space<vmem>>, %arg11: memref<1x16xf32, #tpu.memory_space<vmem>>, %arg12: memref<16x16xf32, #tpu.memory_space<vmem>>, %arg13: memref<1x16xf32, #tpu.memory_space<vmem>>, %arg14: memref<16x12xf32, #tpu.memory_space<vmem>>, %arg15: memref<1x12xf32, #tpu.memory_space<vmem>>, %arg16: memref<2x16x12xf32, #tpu.memory_space<vmem>>) attributes {dimension_semantics = [#tpu.dimension_semantics<arbitrary>], iteration_bounds = array<i64: 1>, scalar_prefetch = 0 : i64, scratch_operands = 0 : i64, tpu.core_type = #tpu.core_type<tc>, window_params = [{pipeline_mode = #tpu.pipeline_mode<synchronous>, transform_indices = @transform_0, window_bounds = array<i64: 2, 16, 8>}, {pipeline_mode = #tpu.pipeline_mode<synchronous>, transform_indices = @transform_1, window_bounds = array<i64: 5, 8, 16>}, {pipeline_mode = #tpu.pipeline_mode<synchronous>, transform_indices = @transform_2, window_bounds = array<i64: 1, 16>}, {pipeline_mode = #tpu.pipeline_mode<synchronous>, transform_indices = @transform_3, window_bounds = array<i64: 5, 16, 16>}, {pipeline_mode = #tpu.pipeline_mode<synchronous>, transform_indices = @transform_4, window_bounds = array<i64: 1, 16>}, {pipeline_mode = #tpu.pipeline_mode<synchronous>, transform_indices = @transform_5, window_bounds = array<i64: 8, 16>}, {pipeline_mode = #tpu.pipeline_mode<synchronous>, transform_indices = @transform_6, window_bounds = array<i64: 1, 16>}, {pipeline_mode = #tpu.pipeline_mode<synchronous>, transform_indices = @transform_7, window_bounds = array<i64: 5, 16, 16>}, {pipeline_mode = #tpu.pipeline_mode<synchronous>, transform_indices = @transform_8, window_bounds = array<i64: 1, 16>}, {pipeline_mode = #tpu.pipeline_mode<synchronous>, transform_indices = @transform_9, window_bounds = array<i64: 5, 16, 16>}, {pipeline_mode = #tpu.pipeline_mode<synchronous>, transform_indices = @transform_10, window_bounds = array<i64: 1, 16>}, {pipeline_mode = #tpu.pipeline_mode<synchronous>, transform_indices = @transform_11, window_bounds = array<i64: 16, 16>}, {pipeline_mode = #tpu.pipeline_mode<synchronous>, transform_indices = @transform_12, window_bounds = array<i64: 1, 16>}, {pipeline_mode = #tpu.pipeline_mode<synchronous>, transform_indices = @transform_13, window_bounds = array<i64: 16, 12>}, {pipeline_mode = #tpu.pipeline_mode<synchronous>, transform_indices = @transform_14, window_bounds = array<i64: 1, 12>}, {pipeline_mode = #tpu.pipeline_mode<synchronous>, transform_indices = @transform_15, window_bounds = array<i64: 2, 16, 12>}]} {
    %c0 = arith.constant 0 : index
    %c0_0 = arith.constant 0 : index
    %c0_1 = arith.constant 0 : index
    %0 = vector.load %arg1[%c0, %c0_0, %c0_1] : memref<2x16x8xf32, #tpu.memory_space<vmem>>, vector<1x16x8xf32>
    %1 = vector.shape_cast %0 : vector<1x16x8xf32> to vector<16x8xf32>
    %c1 = arith.constant 1 : index
    %c0_2 = arith.constant 0 : index
    %c0_3 = arith.constant 0 : index
    %2 = vector.load %arg1[%c1, %c0_2, %c0_3] : memref<2x16x8xf32, #tpu.memory_space<vmem>>, vector<1x16x8xf32>
    %3 = vector.shape_cast %2 : vector<1x16x8xf32> to vector<16x8xf32>
    %4 = tpu.concatenate %1, %3 in 0 : vector<16x8xf32>, vector<16x8xf32> -> vector<32x8xf32>
    %c0_4 = arith.constant 0 : index
    %c0_5 = arith.constant 0 : index
    %5 = vector.load %arg6[%c0_4, %c0_5] : memref<8x16xf32, #tpu.memory_space<vmem>>, vector<8x16xf32>
    %cst = arith.constant dense<0.000000e+00> : vector<32x16xf32>
    %6 = tpu.matmul %4, %5, %cst {dimension_numbers = #tpu.dot_dimension_numbers<[1], [0], [0], [1], [0, 0, 1, 1], [], []>} : vector<32x8xf32>, vector<8x16xf32>, vector<32x16xf32> -> vector<32x16xf32>
    %c0_6 = arith.constant 0 : index
    %c0_7 = arith.constant 0 : index
    %7 = vector.load %arg7[%c0_6, %c0_7] : memref<1x16xf32, #tpu.memory_space<vmem>>, vector<1x16xf32>
    %8 = vector.broadcast %7 : vector<1x16xf32> to vector<32x16xf32>
    %9 = arith.addf %6, %8 : vector<32x16xf32>
    %cst_8 = arith.constant 0.000000e+00 : f32
    %10 = vector.broadcast %cst_8 : f32 to vector<8x8xf32>
    %11 = vector.extract_strided_slice %4 {offsets = [0, 0], sizes = [16, 8], strides = [1, 1]} : vector<32x8xf32> to vector<16x8xf32>
    %12 = tpu.concatenate %10, %11, %10 in 0 : vector<8x8xf32>, vector<16x8xf32>, vector<8x8xf32> -> vector<32x8xf32>
    %13 = vector.extract_strided_slice %4 {offsets = [16, 0], sizes = [16, 8], strides = [1, 1]} : vector<32x8xf32> to vector<16x8xf32>
    %14 = tpu.concatenate %10, %13, %10 in 0 : vector<8x8xf32>, vector<16x8xf32>, vector<8x8xf32> -> vector<32x8xf32>
    %cst_9 = arith.constant 0.000000e+00 : f32
    %15 = vector.broadcast %cst_9 : f32 to vector<32x16xf32>
    %16 = vector.extract_strided_slice %12 {offsets = [6, 0], sizes = [16, 8], strides = [1, 1]} : vector<32x8xf32> to vector<16x8xf32>
    %17 = vector.extract_strided_slice %14 {offsets = [6, 0], sizes = [16, 8], strides = [1, 1]} : vector<32x8xf32> to vector<16x8xf32>
    %18 = tpu.concatenate %16, %17 in 0 : vector<16x8xf32>, vector<16x8xf32> -> vector<32x8xf32>
    %c0_10 = arith.constant 0 : index
    %c0_11 = arith.constant 0 : index
    %c0_12 = arith.constant 0 : index
    %19 = vector.load %arg2[%c0_10, %c0_11, %c0_12] : memref<5x8x16xf32, #tpu.memory_space<vmem>>, vector<1x8x16xf32>
    %20 = vector.shape_cast %19 : vector<1x8x16xf32> to vector<8x16xf32>
    %cst_13 = arith.constant dense<0.000000e+00> : vector<32x16xf32>
    %21 = tpu.matmul %18, %20, %cst_13 {dimension_numbers = #tpu.dot_dimension_numbers<[1], [0], [0], [1], [0, 0, 1, 1], [], []>} : vector<32x8xf32>, vector<8x16xf32>, vector<32x16xf32> -> vector<32x16xf32>
    %22 = arith.addf %15, %21 : vector<32x16xf32>
    %23 = vector.extract_strided_slice %12 {offsets = [7, 0], sizes = [16, 8], strides = [1, 1]} : vector<32x8xf32> to vector<16x8xf32>
    %24 = vector.extract_strided_slice %14 {offsets = [7, 0], sizes = [16, 8], strides = [1, 1]} : vector<32x8xf32> to vector<16x8xf32>
    %25 = tpu.concatenate %23, %24 in 0 : vector<16x8xf32>, vector<16x8xf32> -> vector<32x8xf32>
    %c1_14 = arith.constant 1 : index
    %c0_15 = arith.constant 0 : index
    %c0_16 = arith.constant 0 : index
    %26 = vector.load %arg2[%c1_14, %c0_15, %c0_16] : memref<5x8x16xf32, #tpu.memory_space<vmem>>, vector<1x8x16xf32>
    %27 = vector.shape_cast %26 : vector<1x8x16xf32> to vector<8x16xf32>
    %cst_17 = arith.constant dense<0.000000e+00> : vector<32x16xf32>
    %28 = tpu.matmul %25, %27, %cst_17 {dimension_numbers = #tpu.dot_dimension_numbers<[1], [0], [0], [1], [0, 0, 1, 1], [], []>} : vector<32x8xf32>, vector<8x16xf32>, vector<32x16xf32> -> vector<32x16xf32>
    %29 = arith.addf %22, %28 : vector<32x16xf32>
    %30 = vector.extract_strided_slice %12 {offsets = [8, 0], sizes = [16, 8], strides = [1, 1]} : vector<32x8xf32> to vector<16x8xf32>
    %31 = vector.extract_strided_slice %14 {offsets = [8, 0], sizes = [16, 8], strides = [1, 1]} : vector<32x8xf32> to vector<16x8xf32>
    %32 = tpu.concatenate %30, %31 in 0 : vector<16x8xf32>, vector<16x8xf32> -> vector<32x8xf32>
    %c2 = arith.constant 2 : index
    %c0_18 = arith.constant 0 : index
    %c0_19 = arith.constant 0 : index
    %33 = vector.load %arg2[%c2, %c0_18, %c0_19] : memref<5x8x16xf32, #tpu.memory_space<vmem>>, vector<1x8x16xf32>
    %34 = vector.shape_cast %33 : vector<1x8x16xf32> to vector<8x16xf32>
    %cst_20 = arith.constant dense<0.000000e+00> : vector<32x16xf32>
    %35 = tpu.matmul %32, %34, %cst_20 {dimension_numbers = #tpu.dot_dimension_numbers<[1], [0], [0], [1], [0, 0, 1, 1], [], []>} : vector<32x8xf32>, vector<8x16xf32>, vector<32x16xf32> -> vector<32x16xf32>
    %36 = arith.addf %29, %35 : vector<32x16xf32>
    %37 = vector.extract_strided_slice %12 {offsets = [9, 0], sizes = [16, 8], strides = [1, 1]} : vector<32x8xf32> to vector<16x8xf32>
    %38 = vector.extract_strided_slice %14 {offsets = [9, 0], sizes = [16, 8], strides = [1, 1]} : vector<32x8xf32> to vector<16x8xf32>
    %39 = tpu.concatenate %37, %38 in 0 : vector<16x8xf32>, vector<16x8xf32> -> vector<32x8xf32>
    %c3 = arith.constant 3 : index
    %c0_21 = arith.constant 0 : index
    %c0_22 = arith.constant 0 : index
    %40 = vector.load %arg2[%c3, %c0_21, %c0_22] : memref<5x8x16xf32, #tpu.memory_space<vmem>>, vector<1x8x16xf32>
    %41 = vector.shape_cast %40 : vector<1x8x16xf32> to vector<8x16xf32>
    %cst_23 = arith.constant dense<0.000000e+00> : vector<32x16xf32>
    %42 = tpu.matmul %39, %41, %cst_23 {dimension_numbers = #tpu.dot_dimension_numbers<[1], [0], [0], [1], [0, 0, 1, 1], [], []>} : vector<32x8xf32>, vector<8x16xf32>, vector<32x16xf32> -> vector<32x16xf32>
    %43 = arith.addf %36, %42 : vector<32x16xf32>
    %44 = vector.extract_strided_slice %12 {offsets = [10, 0], sizes = [16, 8], strides = [1, 1]} : vector<32x8xf32> to vector<16x8xf32>
    %45 = vector.extract_strided_slice %14 {offsets = [10, 0], sizes = [16, 8], strides = [1, 1]} : vector<32x8xf32> to vector<16x8xf32>
    %46 = tpu.concatenate %44, %45 in 0 : vector<16x8xf32>, vector<16x8xf32> -> vector<32x8xf32>
    %c4 = arith.constant 4 : index
    %c0_24 = arith.constant 0 : index
    %c0_25 = arith.constant 0 : index
    %47 = vector.load %arg2[%c4, %c0_24, %c0_25] : memref<5x8x16xf32, #tpu.memory_space<vmem>>, vector<1x8x16xf32>
    %48 = vector.shape_cast %47 : vector<1x8x16xf32> to vector<8x16xf32>
    %cst_26 = arith.constant dense<0.000000e+00> : vector<32x16xf32>
    %49 = tpu.matmul %46, %48, %cst_26 {dimension_numbers = #tpu.dot_dimension_numbers<[1], [0], [0], [1], [0, 0, 1, 1], [], []>} : vector<32x8xf32>, vector<8x16xf32>, vector<32x16xf32> -> vector<32x16xf32>
    %50 = arith.addf %43, %49 : vector<32x16xf32>
    %c0_27 = arith.constant 0 : index
    %c0_28 = arith.constant 0 : index
    %51 = vector.load %arg3[%c0_27, %c0_28] : memref<1x16xf32, #tpu.memory_space<vmem>>, vector<1x16xf32>
    %52 = vector.broadcast %51 : vector<1x16xf32> to vector<32x16xf32>
    %53 = arith.addf %50, %52 : vector<32x16xf32>
    %cst_29 = arith.constant 0.000000e+00 : f32
    %54 = vector.broadcast %cst_29 : f32 to vector<32x16xf32>
    %55 = arith.maximumf %53, %54 : vector<32x16xf32>
    %cst_30 = arith.constant 0.000000e+00 : f32
    %56 = vector.broadcast %cst_30 : f32 to vector<8x16xf32>
    %57 = vector.extract_strided_slice %55 {offsets = [0, 0], sizes = [16, 16], strides = [1, 1]} : vector<32x16xf32> to vector<16x16xf32>
    %58 = tpu.concatenate %56, %57, %56 in 0 : vector<8x16xf32>, vector<16x16xf32>, vector<8x16xf32> -> vector<32x16xf32>
    %59 = vector.extract_strided_slice %55 {offsets = [16, 0], sizes = [16, 16], strides = [1, 1]} : vector<32x16xf32> to vector<16x16xf32>
    %60 = tpu.concatenate %56, %59, %56 in 0 : vector<8x16xf32>, vector<16x16xf32>, vector<8x16xf32> -> vector<32x16xf32>
    %cst_31 = arith.constant 0.000000e+00 : f32
    %61 = vector.broadcast %cst_31 : f32 to vector<32x16xf32>
    %62 = vector.extract_strided_slice %58 {offsets = [6, 0], sizes = [16, 16], strides = [1, 1]} : vector<32x16xf32> to vector<16x16xf32>
    %63 = vector.extract_strided_slice %60 {offsets = [6, 0], sizes = [16, 16], strides = [1, 1]} : vector<32x16xf32> to vector<16x16xf32>
    %64 = tpu.concatenate %62, %63 in 0 : vector<16x16xf32>, vector<16x16xf32> -> vector<32x16xf32>
    %c0_32 = arith.constant 0 : index
    %c0_33 = arith.constant 0 : index
    %c0_34 = arith.constant 0 : index
    %65 = vector.load %arg4[%c0_32, %c0_33, %c0_34] : memref<5x16x16xf32, #tpu.memory_space<vmem>>, vector<1x16x16xf32>
    %66 = vector.shape_cast %65 : vector<1x16x16xf32> to vector<16x16xf32>
    %cst_35 = arith.constant dense<0.000000e+00> : vector<32x16xf32>
    %67 = tpu.matmul %64, %66, %cst_35 {dimension_numbers = #tpu.dot_dimension_numbers<[1], [0], [0], [1], [0, 0, 1, 1], [], []>} : vector<32x16xf32>, vector<16x16xf32>, vector<32x16xf32> -> vector<32x16xf32>
    %68 = arith.addf %61, %67 : vector<32x16xf32>
    %69 = vector.extract_strided_slice %58 {offsets = [7, 0], sizes = [16, 16], strides = [1, 1]} : vector<32x16xf32> to vector<16x16xf32>
    %70 = vector.extract_strided_slice %60 {offsets = [7, 0], sizes = [16, 16], strides = [1, 1]} : vector<32x16xf32> to vector<16x16xf32>
    %71 = tpu.concatenate %69, %70 in 0 : vector<16x16xf32>, vector<16x16xf32> -> vector<32x16xf32>
    %c1_36 = arith.constant 1 : index
    %c0_37 = arith.constant 0 : index
    %c0_38 = arith.constant 0 : index
    %72 = vector.load %arg4[%c1_36, %c0_37, %c0_38] : memref<5x16x16xf32, #tpu.memory_space<vmem>>, vector<1x16x16xf32>
    %73 = vector.shape_cast %72 : vector<1x16x16xf32> to vector<16x16xf32>
    %cst_39 = arith.constant dense<0.000000e+00> : vector<32x16xf32>
    %74 = tpu.matmul %71, %73, %cst_39 {dimension_numbers = #tpu.dot_dimension_numbers<[1], [0], [0], [1], [0, 0, 1, 1], [], []>} : vector<32x16xf32>, vector<16x16xf32>, vector<32x16xf32> -> vector<32x16xf32>
    %75 = arith.addf %68, %74 : vector<32x16xf32>
    %76 = vector.extract_strided_slice %58 {offsets = [8, 0], sizes = [16, 16], strides = [1, 1]} : vector<32x16xf32> to vector<16x16xf32>
    %77 = vector.extract_strided_slice %60 {offsets = [8, 0], sizes = [16, 16], strides = [1, 1]} : vector<32x16xf32> to vector<16x16xf32>
    %78 = tpu.concatenate %76, %77 in 0 : vector<16x16xf32>, vector<16x16xf32> -> vector<32x16xf32>
    %c2_40 = arith.constant 2 : index
    %c0_41 = arith.constant 0 : index
    %c0_42 = arith.constant 0 : index
    %79 = vector.load %arg4[%c2_40, %c0_41, %c0_42] : memref<5x16x16xf32, #tpu.memory_space<vmem>>, vector<1x16x16xf32>
    %80 = vector.shape_cast %79 : vector<1x16x16xf32> to vector<16x16xf32>
    %cst_43 = arith.constant dense<0.000000e+00> : vector<32x16xf32>
    %81 = tpu.matmul %78, %80, %cst_43 {dimension_numbers = #tpu.dot_dimension_numbers<[1], [0], [0], [1], [0, 0, 1, 1], [], []>} : vector<32x16xf32>, vector<16x16xf32>, vector<32x16xf32> -> vector<32x16xf32>
    %82 = arith.addf %75, %81 : vector<32x16xf32>
    %83 = vector.extract_strided_slice %58 {offsets = [9, 0], sizes = [16, 16], strides = [1, 1]} : vector<32x16xf32> to vector<16x16xf32>
    %84 = vector.extract_strided_slice %60 {offsets = [9, 0], sizes = [16, 16], strides = [1, 1]} : vector<32x16xf32> to vector<16x16xf32>
    %85 = tpu.concatenate %83, %84 in 0 : vector<16x16xf32>, vector<16x16xf32> -> vector<32x16xf32>
    %c3_44 = arith.constant 3 : index
    %c0_45 = arith.constant 0 : index
    %c0_46 = arith.constant 0 : index
    %86 = vector.load %arg4[%c3_44, %c0_45, %c0_46] : memref<5x16x16xf32, #tpu.memory_space<vmem>>, vector<1x16x16xf32>
    %87 = vector.shape_cast %86 : vector<1x16x16xf32> to vector<16x16xf32>
    %cst_47 = arith.constant dense<0.000000e+00> : vector<32x16xf32>
    %88 = tpu.matmul %85, %87, %cst_47 {dimension_numbers = #tpu.dot_dimension_numbers<[1], [0], [0], [1], [0, 0, 1, 1], [], []>} : vector<32x16xf32>, vector<16x16xf32>, vector<32x16xf32> -> vector<32x16xf32>
    %89 = arith.addf %82, %88 : vector<32x16xf32>
    %90 = vector.extract_strided_slice %58 {offsets = [10, 0], sizes = [16, 16], strides = [1, 1]} : vector<32x16xf32> to vector<16x16xf32>
    %91 = vector.extract_strided_slice %60 {offsets = [10, 0], sizes = [16, 16], strides = [1, 1]} : vector<32x16xf32> to vector<16x16xf32>
    %92 = tpu.concatenate %90, %91 in 0 : vector<16x16xf32>, vector<16x16xf32> -> vector<32x16xf32>
    %c4_48 = arith.constant 4 : index
    %c0_49 = arith.constant 0 : index
    %c0_50 = arith.constant 0 : index
    %93 = vector.load %arg4[%c4_48, %c0_49, %c0_50] : memref<5x16x16xf32, #tpu.memory_space<vmem>>, vector<1x16x16xf32>
    %94 = vector.shape_cast %93 : vector<1x16x16xf32> to vector<16x16xf32>
    %cst_51 = arith.constant dense<0.000000e+00> : vector<32x16xf32>
    %95 = tpu.matmul %92, %94, %cst_51 {dimension_numbers = #tpu.dot_dimension_numbers<[1], [0], [0], [1], [0, 0, 1, 1], [], []>} : vector<32x16xf32>, vector<16x16xf32>, vector<32x16xf32> -> vector<32x16xf32>
    %96 = arith.addf %89, %95 : vector<32x16xf32>
    %c0_52 = arith.constant 0 : index
    %c0_53 = arith.constant 0 : index
    %97 = vector.load %arg5[%c0_52, %c0_53] : memref<1x16xf32, #tpu.memory_space<vmem>>, vector<1x16xf32>
    %98 = vector.broadcast %97 : vector<1x16xf32> to vector<32x16xf32>
    %99 = arith.addf %96, %98 : vector<32x16xf32>
    %cst_54 = arith.constant 0.000000e+00 : f32
    %100 = vector.broadcast %cst_54 : f32 to vector<32x16xf32>
    %101 = arith.maximumf %99, %100 : vector<32x16xf32>
    %102 = arith.addf %101, %9 : vector<32x16xf32>
    %cst_55 = arith.constant 0.000000e+00 : f32
    %103 = vector.broadcast %cst_55 : f32 to vector<32x16xf32>
    %104 = arith.maximumf %102, %103 : vector<32x16xf32>
    %c0_56 = arith.constant 0 : index
    %c0_57 = arith.constant 0 : index
    %105 = vector.load %arg12[%c0_56, %c0_57] : memref<16x16xf32, #tpu.memory_space<vmem>>, vector<16x16xf32>
    %cst_58 = arith.constant dense<0.000000e+00> : vector<32x16xf32>
    %106 = tpu.matmul %104, %105, %cst_58 {dimension_numbers = #tpu.dot_dimension_numbers<[1], [0], [0], [1], [0, 0, 1, 1], [], []>} : vector<32x16xf32>, vector<16x16xf32>, vector<32x16xf32> -> vector<32x16xf32>
    %c0_59 = arith.constant 0 : index
    %c0_60 = arith.constant 0 : index
    %107 = vector.load %arg13[%c0_59, %c0_60] : memref<1x16xf32, #tpu.memory_space<vmem>>, vector<1x16xf32>
    %108 = vector.broadcast %107 : vector<1x16xf32> to vector<32x16xf32>
    %109 = arith.addf %106, %108 : vector<32x16xf32>
    %cst_61 = arith.constant 0.000000e+00 : f32
    %110 = vector.broadcast %cst_61 : f32 to vector<8x16xf32>
    %111 = vector.extract_strided_slice %104 {offsets = [0, 0], sizes = [16, 16], strides = [1, 1]} : vector<32x16xf32> to vector<16x16xf32>
    %112 = tpu.concatenate %110, %111, %110 in 0 : vector<8x16xf32>, vector<16x16xf32>, vector<8x16xf32> -> vector<32x16xf32>
    %113 = vector.extract_strided_slice %104 {offsets = [16, 0], sizes = [16, 16], strides = [1, 1]} : vector<32x16xf32> to vector<16x16xf32>
    %114 = tpu.concatenate %110, %113, %110 in 0 : vector<8x16xf32>, vector<16x16xf32>, vector<8x16xf32> -> vector<32x16xf32>
    %cst_62 = arith.constant 0.000000e+00 : f32
    %115 = vector.broadcast %cst_62 : f32 to vector<32x16xf32>
    %116 = vector.extract_strided_slice %112 {offsets = [4, 0], sizes = [16, 16], strides = [1, 1]} : vector<32x16xf32> to vector<16x16xf32>
    %117 = vector.extract_strided_slice %114 {offsets = [4, 0], sizes = [16, 16], strides = [1, 1]} : vector<32x16xf32> to vector<16x16xf32>
    %118 = tpu.concatenate %116, %117 in 0 : vector<16x16xf32>, vector<16x16xf32> -> vector<32x16xf32>
    %c0_63 = arith.constant 0 : index
    %c0_64 = arith.constant 0 : index
    %c0_65 = arith.constant 0 : index
    %119 = vector.load %arg8[%c0_63, %c0_64, %c0_65] : memref<5x16x16xf32, #tpu.memory_space<vmem>>, vector<1x16x16xf32>
    %120 = vector.shape_cast %119 : vector<1x16x16xf32> to vector<16x16xf32>
    %cst_66 = arith.constant dense<0.000000e+00> : vector<32x16xf32>
    %121 = tpu.matmul %118, %120, %cst_66 {dimension_numbers = #tpu.dot_dimension_numbers<[1], [0], [0], [1], [0, 0, 1, 1], [], []>} : vector<32x16xf32>, vector<16x16xf32>, vector<32x16xf32> -> vector<32x16xf32>
    %122 = arith.addf %115, %121 : vector<32x16xf32>
    %123 = vector.extract_strided_slice %112 {offsets = [6, 0], sizes = [16, 16], strides = [1, 1]} : vector<32x16xf32> to vector<16x16xf32>
    %124 = vector.extract_strided_slice %114 {offsets = [6, 0], sizes = [16, 16], strides = [1, 1]} : vector<32x16xf32> to vector<16x16xf32>
    %125 = tpu.concatenate %123, %124 in 0 : vector<16x16xf32>, vector<16x16xf32> -> vector<32x16xf32>
    %c1_67 = arith.constant 1 : index
    %c0_68 = arith.constant 0 : index
    %c0_69 = arith.constant 0 : index
    %126 = vector.load %arg8[%c1_67, %c0_68, %c0_69] : memref<5x16x16xf32, #tpu.memory_space<vmem>>, vector<1x16x16xf32>
    %127 = vector.shape_cast %126 : vector<1x16x16xf32> to vector<16x16xf32>
    %cst_70 = arith.constant dense<0.000000e+00> : vector<32x16xf32>
    %128 = tpu.matmul %125, %127, %cst_70 {dimension_numbers = #tpu.dot_dimension_numbers<[1], [0], [0], [1], [0, 0, 1, 1], [], []>} : vector<32x16xf32>, vector<16x16xf32>, vector<32x16xf32> -> vector<32x16xf32>
    %129 = arith.addf %122, %128 : vector<32x16xf32>
    %130 = vector.extract_strided_slice %112 {offsets = [8, 0], sizes = [16, 16], strides = [1, 1]} : vector<32x16xf32> to vector<16x16xf32>
    %131 = vector.extract_strided_slice %114 {offsets = [8, 0], sizes = [16, 16], strides = [1, 1]} : vector<32x16xf32> to vector<16x16xf32>
    %132 = tpu.concatenate %130, %131 in 0 : vector<16x16xf32>, vector<16x16xf32> -> vector<32x16xf32>
    %c2_71 = arith.constant 2 : index
    %c0_72 = arith.constant 0 : index
    %c0_73 = arith.constant 0 : index
    %133 = vector.load %arg8[%c2_71, %c0_72, %c0_73] : memref<5x16x16xf32, #tpu.memory_space<vmem>>, vector<1x16x16xf32>
    %134 = vector.shape_cast %133 : vector<1x16x16xf32> to vector<16x16xf32>
    %cst_74 = arith.constant dense<0.000000e+00> : vector<32x16xf32>
    %135 = tpu.matmul %132, %134, %cst_74 {dimension_numbers = #tpu.dot_dimension_numbers<[1], [0], [0], [1], [0, 0, 1, 1], [], []>} : vector<32x16xf32>, vector<16x16xf32>, vector<32x16xf32> -> vector<32x16xf32>
    %136 = arith.addf %129, %135 : vector<32x16xf32>
    %137 = vector.extract_strided_slice %112 {offsets = [10, 0], sizes = [16, 16], strides = [1, 1]} : vector<32x16xf32> to vector<16x16xf32>
    %138 = vector.extract_strided_slice %114 {offsets = [10, 0], sizes = [16, 16], strides = [1, 1]} : vector<32x16xf32> to vector<16x16xf32>
    %139 = tpu.concatenate %137, %138 in 0 : vector<16x16xf32>, vector<16x16xf32> -> vector<32x16xf32>
    %c3_75 = arith.constant 3 : index
    %c0_76 = arith.constant 0 : index
    %c0_77 = arith.constant 0 : index
    %140 = vector.load %arg8[%c3_75, %c0_76, %c0_77] : memref<5x16x16xf32, #tpu.memory_space<vmem>>, vector<1x16x16xf32>
    %141 = vector.shape_cast %140 : vector<1x16x16xf32> to vector<16x16xf32>
    %cst_78 = arith.constant dense<0.000000e+00> : vector<32x16xf32>
    %142 = tpu.matmul %139, %141, %cst_78 {dimension_numbers = #tpu.dot_dimension_numbers<[1], [0], [0], [1], [0, 0, 1, 1], [], []>} : vector<32x16xf32>, vector<16x16xf32>, vector<32x16xf32> -> vector<32x16xf32>
    %143 = arith.addf %136, %142 : vector<32x16xf32>
    %144 = vector.extract_strided_slice %112 {offsets = [12, 0], sizes = [16, 16], strides = [1, 1]} : vector<32x16xf32> to vector<16x16xf32>
    %145 = vector.extract_strided_slice %114 {offsets = [12, 0], sizes = [16, 16], strides = [1, 1]} : vector<32x16xf32> to vector<16x16xf32>
    %146 = tpu.concatenate %144, %145 in 0 : vector<16x16xf32>, vector<16x16xf32> -> vector<32x16xf32>
    %c4_79 = arith.constant 4 : index
    %c0_80 = arith.constant 0 : index
    %c0_81 = arith.constant 0 : index
    %147 = vector.load %arg8[%c4_79, %c0_80, %c0_81] : memref<5x16x16xf32, #tpu.memory_space<vmem>>, vector<1x16x16xf32>
    %148 = vector.shape_cast %147 : vector<1x16x16xf32> to vector<16x16xf32>
    %cst_82 = arith.constant dense<0.000000e+00> : vector<32x16xf32>
    %149 = tpu.matmul %146, %148, %cst_82 {dimension_numbers = #tpu.dot_dimension_numbers<[1], [0], [0], [1], [0, 0, 1, 1], [], []>} : vector<32x16xf32>, vector<16x16xf32>, vector<32x16xf32> -> vector<32x16xf32>
    %150 = arith.addf %143, %149 : vector<32x16xf32>
    %c0_83 = arith.constant 0 : index
    %c0_84 = arith.constant 0 : index
    %151 = vector.load %arg9[%c0_83, %c0_84] : memref<1x16xf32, #tpu.memory_space<vmem>>, vector<1x16xf32>
    %152 = vector.broadcast %151 : vector<1x16xf32> to vector<32x16xf32>
    %153 = arith.addf %150, %152 : vector<32x16xf32>
    %cst_85 = arith.constant 0.000000e+00 : f32
    %154 = vector.broadcast %cst_85 : f32 to vector<32x16xf32>
    %155 = arith.maximumf %153, %154 : vector<32x16xf32>
    %cst_86 = arith.constant 0.000000e+00 : f32
    %156 = vector.broadcast %cst_86 : f32 to vector<8x16xf32>
    %157 = vector.extract_strided_slice %155 {offsets = [0, 0], sizes = [16, 16], strides = [1, 1]} : vector<32x16xf32> to vector<16x16xf32>
    %158 = tpu.concatenate %156, %157, %156 in 0 : vector<8x16xf32>, vector<16x16xf32>, vector<8x16xf32> -> vector<32x16xf32>
    %159 = vector.extract_strided_slice %155 {offsets = [16, 0], sizes = [16, 16], strides = [1, 1]} : vector<32x16xf32> to vector<16x16xf32>
    %160 = tpu.concatenate %156, %159, %156 in 0 : vector<8x16xf32>, vector<16x16xf32>, vector<8x16xf32> -> vector<32x16xf32>
    %cst_87 = arith.constant 0.000000e+00 : f32
    %161 = vector.broadcast %cst_87 : f32 to vector<32x16xf32>
    %162 = vector.extract_strided_slice %158 {offsets = [4, 0], sizes = [16, 16], strides = [1, 1]} : vector<32x16xf32> to vector<16x16xf32>
    %163 = vector.extract_strided_slice %160 {offsets = [4, 0], sizes = [16, 16], strides = [1, 1]} : vector<32x16xf32> to vector<16x16xf32>
    %164 = tpu.concatenate %162, %163 in 0 : vector<16x16xf32>, vector<16x16xf32> -> vector<32x16xf32>
    %c0_88 = arith.constant 0 : index
    %c0_89 = arith.constant 0 : index
    %c0_90 = arith.constant 0 : index
    %165 = vector.load %arg10[%c0_88, %c0_89, %c0_90] : memref<5x16x16xf32, #tpu.memory_space<vmem>>, vector<1x16x16xf32>
    %166 = vector.shape_cast %165 : vector<1x16x16xf32> to vector<16x16xf32>
    %cst_91 = arith.constant dense<0.000000e+00> : vector<32x16xf32>
    %167 = tpu.matmul %164, %166, %cst_91 {dimension_numbers = #tpu.dot_dimension_numbers<[1], [0], [0], [1], [0, 0, 1, 1], [], []>} : vector<32x16xf32>, vector<16x16xf32>, vector<32x16xf32> -> vector<32x16xf32>
    %168 = arith.addf %161, %167 : vector<32x16xf32>
    %169 = vector.extract_strided_slice %158 {offsets = [6, 0], sizes = [16, 16], strides = [1, 1]} : vector<32x16xf32> to vector<16x16xf32>
    %170 = vector.extract_strided_slice %160 {offsets = [6, 0], sizes = [16, 16], strides = [1, 1]} : vector<32x16xf32> to vector<16x16xf32>
    %171 = tpu.concatenate %169, %170 in 0 : vector<16x16xf32>, vector<16x16xf32> -> vector<32x16xf32>
    %c1_92 = arith.constant 1 : index
    %c0_93 = arith.constant 0 : index
    %c0_94 = arith.constant 0 : index
    %172 = vector.load %arg10[%c1_92, %c0_93, %c0_94] : memref<5x16x16xf32, #tpu.memory_space<vmem>>, vector<1x16x16xf32>
    %173 = vector.shape_cast %172 : vector<1x16x16xf32> to vector<16x16xf32>
    %cst_95 = arith.constant dense<0.000000e+00> : vector<32x16xf32>
    %174 = tpu.matmul %171, %173, %cst_95 {dimension_numbers = #tpu.dot_dimension_numbers<[1], [0], [0], [1], [0, 0, 1, 1], [], []>} : vector<32x16xf32>, vector<16x16xf32>, vector<32x16xf32> -> vector<32x16xf32>
    %175 = arith.addf %168, %174 : vector<32x16xf32>
    %176 = vector.extract_strided_slice %158 {offsets = [8, 0], sizes = [16, 16], strides = [1, 1]} : vector<32x16xf32> to vector<16x16xf32>
    %177 = vector.extract_strided_slice %160 {offsets = [8, 0], sizes = [16, 16], strides = [1, 1]} : vector<32x16xf32> to vector<16x16xf32>
    %178 = tpu.concatenate %176, %177 in 0 : vector<16x16xf32>, vector<16x16xf32> -> vector<32x16xf32>
    %c2_96 = arith.constant 2 : index
    %c0_97 = arith.constant 0 : index
    %c0_98 = arith.constant 0 : index
    %179 = vector.load %arg10[%c2_96, %c0_97, %c0_98] : memref<5x16x16xf32, #tpu.memory_space<vmem>>, vector<1x16x16xf32>
    %180 = vector.shape_cast %179 : vector<1x16x16xf32> to vector<16x16xf32>
    %cst_99 = arith.constant dense<0.000000e+00> : vector<32x16xf32>
    %181 = tpu.matmul %178, %180, %cst_99 {dimension_numbers = #tpu.dot_dimension_numbers<[1], [0], [0], [1], [0, 0, 1, 1], [], []>} : vector<32x16xf32>, vector<16x16xf32>, vector<32x16xf32> -> vector<32x16xf32>
    %182 = arith.addf %175, %181 : vector<32x16xf32>
    %183 = vector.extract_strided_slice %158 {offsets = [10, 0], sizes = [16, 16], strides = [1, 1]} : vector<32x16xf32> to vector<16x16xf32>
    %184 = vector.extract_strided_slice %160 {offsets = [10, 0], sizes = [16, 16], strides = [1, 1]} : vector<32x16xf32> to vector<16x16xf32>
    %185 = tpu.concatenate %183, %184 in 0 : vector<16x16xf32>, vector<16x16xf32> -> vector<32x16xf32>
    %c3_100 = arith.constant 3 : index
    %c0_101 = arith.constant 0 : index
    %c0_102 = arith.constant 0 : index
    %186 = vector.load %arg10[%c3_100, %c0_101, %c0_102] : memref<5x16x16xf32, #tpu.memory_space<vmem>>, vector<1x16x16xf32>
    %187 = vector.shape_cast %186 : vector<1x16x16xf32> to vector<16x16xf32>
    %cst_103 = arith.constant dense<0.000000e+00> : vector<32x16xf32>
    %188 = tpu.matmul %185, %187, %cst_103 {dimension_numbers = #tpu.dot_dimension_numbers<[1], [0], [0], [1], [0, 0, 1, 1], [], []>} : vector<32x16xf32>, vector<16x16xf32>, vector<32x16xf32> -> vector<32x16xf32>
    %189 = arith.addf %182, %188 : vector<32x16xf32>
    %190 = vector.extract_strided_slice %158 {offsets = [12, 0], sizes = [16, 16], strides = [1, 1]} : vector<32x16xf32> to vector<16x16xf32>
    %191 = vector.extract_strided_slice %160 {offsets = [12, 0], sizes = [16, 16], strides = [1, 1]} : vector<32x16xf32> to vector<16x16xf32>
    %192 = tpu.concatenate %190, %191 in 0 : vector<16x16xf32>, vector<16x16xf32> -> vector<32x16xf32>
    %c4_104 = arith.constant 4 : index
    %c0_105 = arith.constant 0 : index
    %c0_106 = arith.constant 0 : index
    %193 = vector.load %arg10[%c4_104, %c0_105, %c0_106] : memref<5x16x16xf32, #tpu.memory_space<vmem>>, vector<1x16x16xf32>
    %194 = vector.shape_cast %193 : vector<1x16x16xf32> to vector<16x16xf32>
    %cst_107 = arith.constant dense<0.000000e+00> : vector<32x16xf32>
    %195 = tpu.matmul %192, %194, %cst_107 {dimension_numbers = #tpu.dot_dimension_numbers<[1], [0], [0], [1], [0, 0, 1, 1], [], []>} : vector<32x16xf32>, vector<16x16xf32>, vector<32x16xf32> -> vector<32x16xf32>
    %196 = arith.addf %189, %195 : vector<32x16xf32>
    %c0_108 = arith.constant 0 : index
    %c0_109 = arith.constant 0 : index
    %197 = vector.load %arg11[%c0_108, %c0_109] : memref<1x16xf32, #tpu.memory_space<vmem>>, vector<1x16xf32>
    %198 = vector.broadcast %197 : vector<1x16xf32> to vector<32x16xf32>
    %199 = arith.addf %196, %198 : vector<32x16xf32>
    %cst_110 = arith.constant 0.000000e+00 : f32
    %200 = vector.broadcast %cst_110 : f32 to vector<32x16xf32>
    %201 = arith.maximumf %199, %200 : vector<32x16xf32>
    %202 = arith.addf %201, %109 : vector<32x16xf32>
    %cst_111 = arith.constant 0.000000e+00 : f32
    %203 = vector.broadcast %cst_111 : f32 to vector<32x16xf32>
    %204 = arith.maximumf %202, %203 : vector<32x16xf32>
    %c0_112 = arith.constant 0 : index
    %c0_113 = arith.constant 0 : index
    %205 = vector.load %arg14[%c0_112, %c0_113] : memref<16x12xf32, #tpu.memory_space<vmem>>, vector<16x12xf32>
    %cst_114 = arith.constant dense<0.000000e+00> : vector<32x12xf32>
    %206 = tpu.matmul %204, %205, %cst_114 {dimension_numbers = #tpu.dot_dimension_numbers<[1], [0], [0], [1], [0, 0, 1, 1], [], []>} : vector<32x16xf32>, vector<16x12xf32>, vector<32x12xf32> -> vector<32x12xf32>
    %c0_115 = arith.constant 0 : index
    %c0_116 = arith.constant 0 : index
    %207 = vector.load %arg15[%c0_115, %c0_116] : memref<1x12xf32, #tpu.memory_space<vmem>>, vector<1x12xf32>
    %208 = vector.broadcast %207 : vector<1x12xf32> to vector<32x12xf32>
    %209 = arith.addf %206, %208 : vector<32x12xf32>
    %210 = vector.extract_strided_slice %209 {offsets = [0, 0], sizes = [16, 12], strides = [1, 1]} : vector<32x12xf32> to vector<16x12xf32>
    %c0_117 = arith.constant 0 : index
    %c0_118 = arith.constant 0 : index
    %c0_119 = arith.constant 0 : index
    %211 = vector.load %arg16[%c0_117, %c0_118, %c0_119] : memref<2x16x12xf32, #tpu.memory_space<vmem>>, vector<1x16x12xf32>
    %212 = vector.shape_cast %211 : vector<1x16x12xf32> to vector<16x12xf32>
    %213 = vector.shape_cast %210 : vector<16x12xf32> to vector<1x16x12xf32>
    tpu.vector_store %arg16[%c0_117, %c0_118, %c0_119], %213 {strides = array<i32>} : memref<2x16x12xf32, #tpu.memory_space<vmem>>, vector<1x16x12xf32>,
    %214 = vector.extract_strided_slice %209 {offsets = [16, 0], sizes = [16, 12], strides = [1, 1]} : vector<32x12xf32> to vector<16x12xf32>
    %c1_120 = arith.constant 1 : index
    %c0_121 = arith.constant 0 : index
    %c0_122 = arith.constant 0 : index
    %215 = vector.load %arg16[%c1_120, %c0_121, %c0_122] : memref<2x16x12xf32, #tpu.memory_space<vmem>>, vector<1x16x12xf32>
    %216 = vector.shape_cast %215 : vector<1x16x12xf32> to vector<16x12xf32>
    %217 = vector.shape_cast %214 : vector<16x12xf32> to vector<1x16x12xf32>
    tpu.vector_store %arg16[%c1_120, %c0_121, %c0_122], %217 {strides = array<i32>} : memref<2x16x12xf32, #tpu.memory_space<vmem>>, vector<1x16x12xf32>,
    return
  }
  func.func @transform_0(%arg0: i32) -> (i32, i32, i32) {
    %c0_i32 = arith.constant 0 : i32
    %c0_i32_0 = arith.constant 0 : i32
    %c0_i32_1 = arith.constant 0 : i32
    %c0_i32_2 = arith.constant 0 : i32
    return %c0_i32, %c0_i32_0, %c0_i32_1 : i32, i32, i32
  }
  func.func @transform_1(%arg0: i32) -> (i32, i32, i32) {
    %c0_i32 = arith.constant 0 : i32
    %c0_i32_0 = arith.constant 0 : i32
    %c0_i32_1 = arith.constant 0 : i32
    %c0_i32_2 = arith.constant 0 : i32
    return %c0_i32, %c0_i32_0, %c0_i32_1 : i32, i32, i32
  }
  func.func @transform_2(%arg0: i32) -> (i32, i32) {
    %c0_i32 = arith.constant 0 : i32
    %c0_i32_0 = arith.constant 0 : i32
    %c0_i32_1 = arith.constant 0 : i32
    return %c0_i32, %c0_i32_0 : i32, i32
  }
  func.func @transform_3(%arg0: i32) -> (i32, i32, i32) {
    %c0_i32 = arith.constant 0 : i32
    %c0_i32_0 = arith.constant 0 : i32
    %c0_i32_1 = arith.constant 0 : i32
    %c0_i32_2 = arith.constant 0 : i32
    return %c0_i32, %c0_i32_0, %c0_i32_1 : i32, i32, i32
  }
  func.func @transform_4(%arg0: i32) -> (i32, i32) {
    %c0_i32 = arith.constant 0 : i32
    %c0_i32_0 = arith.constant 0 : i32
    %c0_i32_1 = arith.constant 0 : i32
    return %c0_i32, %c0_i32_0 : i32, i32
  }
  func.func @transform_5(%arg0: i32) -> (i32, i32) {
    %c0_i32 = arith.constant 0 : i32
    %c0_i32_0 = arith.constant 0 : i32
    %c0_i32_1 = arith.constant 0 : i32
    return %c0_i32, %c0_i32_0 : i32, i32
  }
  func.func @transform_6(%arg0: i32) -> (i32, i32) {
    %c0_i32 = arith.constant 0 : i32
    %c0_i32_0 = arith.constant 0 : i32
    %c0_i32_1 = arith.constant 0 : i32
    return %c0_i32, %c0_i32_0 : i32, i32
  }
  func.func @transform_7(%arg0: i32) -> (i32, i32, i32) {
    %c0_i32 = arith.constant 0 : i32
    %c0_i32_0 = arith.constant 0 : i32
    %c0_i32_1 = arith.constant 0 : i32
    %c0_i32_2 = arith.constant 0 : i32
    return %c0_i32, %c0_i32_0, %c0_i32_1 : i32, i32, i32
  }
  func.func @transform_8(%arg0: i32) -> (i32, i32) {
    %c0_i32 = arith.constant 0 : i32
    %c0_i32_0 = arith.constant 0 : i32
    %c0_i32_1 = arith.constant 0 : i32
    return %c0_i32, %c0_i32_0 : i32, i32
  }
  func.func @transform_9(%arg0: i32) -> (i32, i32, i32) {
    %c0_i32 = arith.constant 0 : i32
    %c0_i32_0 = arith.constant 0 : i32
    %c0_i32_1 = arith.constant 0 : i32
    %c0_i32_2 = arith.constant 0 : i32
    return %c0_i32, %c0_i32_0, %c0_i32_1 : i32, i32, i32
  }
  func.func @transform_10(%arg0: i32) -> (i32, i32) {
    %c0_i32 = arith.constant 0 : i32
    %c0_i32_0 = arith.constant 0 : i32
    %c0_i32_1 = arith.constant 0 : i32
    return %c0_i32, %c0_i32_0 : i32, i32
  }
  func.func @transform_11(%arg0: i32) -> (i32, i32) {
    %c0_i32 = arith.constant 0 : i32
    %c0_i32_0 = arith.constant 0 : i32
    %c0_i32_1 = arith.constant 0 : i32
    return %c0_i32, %c0_i32_0 : i32, i32
  }
  func.func @transform_12(%arg0: i32) -> (i32, i32) {
    %c0_i32 = arith.constant 0 : i32
    %c0_i32_0 = arith.constant 0 : i32
    %c0_i32_1 = arith.constant 0 : i32
    return %c0_i32, %c0_i32_0 : i32, i32
  }
  func.func @transform_13(%arg0: i32) -> (i32, i32) {
    %c0_i32 = arith.constant 0 : i32
    %c0_i32_0 = arith.constant 0 : i32
    %c0_i32_1 = arith.constant 0 : i32
    return %c0_i32, %c0_i32_0 : i32, i32
  }
  func.func @transform_14(%arg0: i32) -> (i32, i32) {
    %c0_i32 = arith.constant 0 : i32
    %c0_i32_0 = arith.constant 0 : i32
    %c0_i32_1 = arith.constant 0 : i32
    return %c0_i32, %c0_i32_0 : i32, i32
  }
  func.func @transform_15(%arg0: i32) -> (i32, i32, i32) {
    %c0_i32 = arith.constant 0 : i32
    %c0_i32_0 = arith.constant 0 : i32
    %c0_i32_1 = arith.constant 0 : i32
    %c0_i32_2 = arith.constant 0 : i32
    return %c0_i32, %c0_i32_0, %c0_i32_1 : i32, i32, i32
  }
}

</mosaic_0001>

<llo_original>
// kernel: tpu_custom_call.1
$region0: #{tpu_custom_call.1}
  #allocation0 [shape = 'u32[]', space=smem, size = 0x4, offset = 0x4, fixed_abs, tag = 'smem constant byte address 0x4 - core index']
  #allocation1 [shape = 'u32[72,128]{1,0:T(1,128)}', space=vmem, size = 0x9000, scoped, tag = 'internal scratch']
  %s0 = inlined_call_operand.vmem [shape: f32[2,16,8], index: 0, kind: input, shape index: {}]
  %s1 = inlined_call_operand.vmem [shape: f32[5,8,16], index: 1, kind: input, shape index: {}]
  %s2 = inlined_call_operand.hbm [shape: f32[1,16], index: 2, kind: input, shape index: {}]
  %s3 = inlined_call_operand.hbm [shape: f32[5,16,16], index: 3, kind: input, shape index: {}]
  %s4 = inlined_call_operand.hbm [shape: f32[1,16], index: 4, kind: input, shape index: {}]
  %s5 = inlined_call_operand.hbm [shape: f32[8,16], index: 5, kind: input, shape index: {}]
  %s6 = inlined_call_operand.hbm [shape: f32[1,16], index: 6, kind: input, shape index: {}]
  %s7 = inlined_call_operand.hbm [shape: f32[5,16,16], index: 7, kind: input, shape index: {}]
  %s8 = inlined_call_operand.hbm [shape: f32[1,16], index: 8, kind: input, shape index: {}]
  %s9 = inlined_call_operand.hbm [shape: f32[5,16,16], index: 9, kind: input, shape index: {}]
  %s10 = inlined_call_operand.vmem [shape: f32[1,16], index: 10, kind: input, shape index: {}]
  %s11 = inlined_call_operand.vmem [shape: f32[16,16], index: 11, kind: input, shape index: {}]
  %s12 = inlined_call_operand.vmem [shape: f32[1,16], index: 12, kind: input, shape index: {}]
  %s13 = inlined_call_operand.hbm [shape: f32[16,12], index: 13, kind: input, shape index: {}]
  %s14 = inlined_call_operand.vmem [shape: f32[1,12], index: 14, kind: input, shape index: {}]
  %s15 = inlined_call_operand.vmem [shape: f32[2,16,12], index: 15, kind: output, shape index: {}]
  %s16 = sld [smem:[#allocation0]]
  $region106: #{tpu_custom_call.1} parent=0
    _
  %s18 = ssub.s32 1, %s16
  %s19 = scalar_select 0, %s18, %s16
  $region1: #{tpu_custom_call.1} parent=0
    #allocation2 [shape = 'u8[512]{0}', space=vmem, size = 0x400, scoped, tag = 'input window, operand 2, single buffered']
    #allocation3 [shape = 's32[1]{0}', space=sflag, size = 0x4, scoped, tag = 'scoped memory for tpu_custom_call.1']
    #allocation4 [shape = 'u8[40960]{0}', space=vmem, size = 0xa000, scoped, tag = 'input window, operand 3, single buffered']
    #allocation5 [shape = 's32[1]{0}', space=sflag, size = 0x4, scoped, tag = 'scoped memory for tpu_custom_call.1']
    #allocation6 [shape = 'u8[512]{0}', space=vmem, size = 0x400, scoped, tag = 'input window, operand 4, single buffered']
    #allocation7 [shape = 'u8[4096]{0}', space=vmem, size = 0x1000, scoped, tag = 'input window, operand 5, single buffered']
    #allocation8 [shape = 's32[1]{0}', space=sflag, size = 0x4, scoped, tag = 'scoped memory for tpu_custom_call.1']
    #allocation9 [shape = 'u8[512]{0}', space=vmem, size = 0x400, scoped, tag = 'input window, operand 6, single buffered']
    #allocation10 [shape = 'u8[40960]{0}', space=vmem, size = 0xa000, scoped, tag = 'input window, operand 7, single buffered']
    #allocation11 [shape = 's32[1]{0}', space=sflag, size = 0x4, scoped, tag = 'scoped memory for tpu_custom_call.1']
    #allocation12 [shape = 'u8[512]{0}', space=vmem, size = 0x400, scoped, tag = 'input window, operand 8, single buffered']
    #allocation13 [shape = 'u8[40960]{0}', space=vmem, size = 0xa000, scoped, tag = 'input window, operand 9, single buffered']
    #allocation14 [shape = 's32[1]{0}', space=sflag, size = 0x4, scoped, tag = 'scoped memory for tpu_custom_call.1']
    #allocation15 [shape = 'u8[8192]{0}', space=vmem, size = 0x2000, scoped, tag = 'input window, operand 13, single buffered']
    %20 = vsyncpa [#allocation3], 0
    %21 = vsyncpa [#allocation5], 0
    %22 = vsyncpa [#allocation8], 0
    %23 = vsyncpa [#allocation11], 0
    %24 = vsyncpa [#allocation14], 0
    // Predicated region
    $region2: #{tpu_custom_call.1} parent=1 // pred_check
      _
    $region3: #{tpu_custom_call.1} parent=1 // pred_check_branch
      %26 = sbr.rel (0) target = $region5
    $region4: #{tpu_custom_call.1} parent=1 // pred_region
      _
    $region5: #{tpu_custom_call.1} parent=1 // pred_fallthru
      _
    // Predicated region
    $region6: #{tpu_custom_call.1} parent=1 // pred_check
      _
    $region7: #{tpu_custom_call.1} parent=1 // pred_check_branch
      %28 = sbr.rel (0) target = $region9
    $region8: #{tpu_custom_call.1} parent=1 // pred_region
      _
    $region9: #{tpu_custom_call.1} parent=1 // pred_fallthru
      _
    // Predicated region
    $region10: #{tpu_custom_call.1} parent=1 // pred_check
      _
    $region11: #{tpu_custom_call.1} parent=1 // pred_check_branch
      %30 = sbr.rel (0) target = $region13
    $region12: #{tpu_custom_call.1} parent=1 // pred_region
      %32 = vsyncadd [#allocation3], 0
      %s34 = sshll.u32 %s2, 4
      %s35 = int_to_ptr.hbm [resolvable:$true] %s34
      %s36 = sshll.u32 [#allocation2], 4
      %s37 = int_to_ptr.vmem [resolvable:$true] %s36
      %39 = dma.hbm_to_vmem [thread:$0]  %s35, 16, %s37, [#allocation3]
    $region13: #{tpu_custom_call.1} parent=1 // pred_fallthru
      _
    // Predicated region
    $region14: #{tpu_custom_call.1} parent=1 // pred_check
      _
    $region15: #{tpu_custom_call.1} parent=1 // pred_check_branch
      %41 = sbr.rel (0) target = $region17
    $region16: #{tpu_custom_call.1} parent=1 // pred_region
      %43 = vsyncadd [#allocation5], 0
      %s44 = sshll.u32 %s3, 4
      %s45 = int_to_ptr.hbm [resolvable:$true] %s44
      %s46 = sshll.u32 [#allocation4], 4
      %s47 = int_to_ptr.vmem [resolvable:$true] %s46
      %52 = dma.hbm_to_vmem [thread:$0]  %s45, 1280, %s47, [#allocation5], 128, 128, 8
    $region17: #{tpu_custom_call.1} parent=1 // pred_fallthru
      _
    // Predicated region
    $region18: #{tpu_custom_call.1} parent=1 // pred_check
      _
    $region19: #{tpu_custom_call.1} parent=1 // pred_check_branch
      %54 = sbr.rel (0) target = $region21
    $region20: #{tpu_custom_call.1} parent=1 // pred_region
      %56 = vsyncadd [#allocation5], 0
      %s58 = sshll.u32 %s4, 4
      %s59 = int_to_ptr.hbm [resolvable:$true] %s58
      %s60 = sshll.u32 [#allocation6], 4
      %s61 = int_to_ptr.vmem [resolvable:$true] %s60
      %63 = dma.hbm_to_vmem [thread:$0]  %s59, 16, %s61, [#allocation5]
    $region21: #{tpu_custom_call.1} parent=1 // pred_fallthru
      _
    // Predicated region
    $region22: #{tpu_custom_call.1} parent=1 // pred_check
      _
    $region23: #{tpu_custom_call.1} parent=1 // pred_check_branch
      %65 = sbr.rel (0) target = $region25
    $region24: #{tpu_custom_call.1} parent=1 // pred_region
      %67 = vsyncadd [#allocation8], 0
      %s69 = sshll.u32 %s5, 4
      %s70 = int_to_ptr.hbm [resolvable:$true] %s69
      %s71 = sshll.u32 [#allocation7], 4
      %s72 = int_to_ptr.vmem [resolvable:$true] %s71
      %74 = dma.hbm_to_vmem [thread:$0]  %s70, 128, %s72, [#allocation8]
    $region25: #{tpu_custom_call.1} parent=1 // pred_fallthru
      _
    // Predicated region
    $region26: #{tpu_custom_call.1} parent=1 // pred_check
      _
    $region27: #{tpu_custom_call.1} parent=1 // pred_check_branch
      %76 = sbr.rel (0) target = $region29
    $region28: #{tpu_custom_call.1} parent=1 // pred_region
      %78 = vsyncadd [#allocation8], 0
      %s80 = sshll.u32 %s6, 4
      %s81 = int_to_ptr.hbm [resolvable:$true] %s80
      %s82 = sshll.u32 [#allocation9], 4
      %s83 = int_to_ptr.vmem [resolvable:$true] %s82
      %85 = dma.hbm_to_vmem [thread:$0]  %s81, 16, %s83, [#allocation8]
    $region29: #{tpu_custom_call.1} parent=1 // pred_fallthru
      _
    // Predicated region
    $region30: #{tpu_custom_call.1} parent=1 // pred_check
      _
    $region31: #{tpu_custom_call.1} parent=1 // pred_check_branch
      %87 = sbr.rel (0) target = $region33
    $region32: #{tpu_custom_call.1} parent=1 // pred_region
      %89 = vsyncadd [#allocation11], 0
      %s90 = sshll.u32 %s7, 4
      %s91 = int_to_ptr.hbm [resolvable:$true] %s90
      %s92 = sshll.u32 [#allocation10], 4
      %s93 = int_to_ptr.vmem [resolvable:$true] %s92
      %98 = dma.hbm_to_vmem [thread:$0]  %s91, 1280, %s93, [#allocation11], 128, 128, 8
    $region33: #{tpu_custom_call.1} parent=1 // pred_fallthru
      _
    // Predicated region
    $region34: #{tpu_custom_call.1} parent=1 // pred_check
      _
    $region35: #{tpu_custom_call.1} parent=1 // pred_check_branch
      %100 = sbr.rel (0) target = $region37
    $region36: #{tpu_custom_call.1} parent=1 // pred_region
      %102 = vsyncadd [#allocation11], 0
      %s104 = sshll.u32 %s8, 4
      %s105 = int_to_ptr.hbm [resolvable:$true] %s104
      %s106 = sshll.u32 [#allocation12], 4
      %s107 = int_to_ptr.vmem [resolvable:$true] %s106
      %109 = dma.hbm_to_vmem [thread:$0]  %s105, 16, %s107, [#allocation11]
    $region37: #{tpu_custom_call.1} parent=1 // pred_fallthru
      _
    // Predicated region
    $region38: #{tpu_custom_call.1} parent=1 // pred_check
      _
    $region39: #{tpu_custom_call.1} parent=1 // pred_check_branch
      %111 = sbr.rel (0) target = $region41
    $region40: #{tpu_custom_call.1} parent=1 // pred_region
      %113 = vsyncadd [#allocation14], 0
      %s114 = sshll.u32 %s9, 4
      %s115 = int_to_ptr.hbm [resolvable:$true] %s114
      %s116 = sshll.u32 [#allocation13], 4
      %s117 = int_to_ptr.vmem [resolvable:$true] %s116
      %122 = dma.hbm_to_vmem [thread:$0]  %s115, 1280, %s117, [#allocation14], 128, 128, 8
    $region41: #{tpu_custom_call.1} parent=1 // pred_fallthru
      _
    // Predicated region
    $region42: #{tpu_custom_call.1} parent=1 // pred_check
      _
    $region43: #{tpu_custom_call.1} parent=1 // pred_check_branch
      %124 = sbr.rel (0) target = $region45
    $region44: #{tpu_custom_call.1} parent=1 // pred_region
      _
    $region45: #{tpu_custom_call.1} parent=1 // pred_fallthru
      _
    // Predicated region
    $region46: #{tpu_custom_call.1} parent=1 // pred_check
      _
    $region47: #{tpu_custom_call.1} parent=1 // pred_check_branch
      %126 = sbr.rel (0) target = $region49
    $region48: #{tpu_custom_call.1} parent=1 // pred_region
      _
    $region49: #{tpu_custom_call.1} parent=1 // pred_fallthru
      _
    // Predicated region
    $region50: #{tpu_custom_call.1} parent=1 // pred_check
      _
    $region51: #{tpu_custom_call.1} parent=1 // pred_check_branch
      %128 = sbr.rel (0) target = $region53
    $region52: #{tpu_custom_call.1} parent=1 // pred_region
      _
    $region53: #{tpu_custom_call.1} parent=1 // pred_fallthru
      _
    // Predicated region
    $region54: #{tpu_custom_call.1} parent=1 // pred_check
      _
    $region55: #{tpu_custom_call.1} parent=1 // pred_check_branch
      %130 = sbr.rel (0) target = $region57
    $region56: #{tpu_custom_call.1} parent=1 // pred_region
      %132 = vsyncadd [#allocation14], 0
      %s133 = sshll.u32 %s13, 4
      %s134 = int_to_ptr.hbm [resolvable:$true] %s133
      %s135 = sshll.u32 [#allocation15], 4
      %s136 = int_to_ptr.vmem [resolvable:$true] %s135
      %141 = dma.hbm_to_vmem [thread:$0]  %s134, 256, %s136, [#allocation14], 128, 128, 8
    $region57: #{tpu_custom_call.1} parent=1 // pred_fallthru
      _
    // Predicated region
    $region58: #{tpu_custom_call.1} parent=1 // pred_check
      _
    $region59: #{tpu_custom_call.1} parent=1 // pred_check_branch
      %143 = sbr.rel (0) target = $region61
    $region60: #{tpu_custom_call.1} parent=1 // pred_region
      _
    $region61: #{tpu_custom_call.1} parent=1 // pred_fallthru
      _
    // Predicated region
    $region62: #{tpu_custom_call.1} parent=1 // pred_check
      _
    $region63: #{tpu_custom_call.1} parent=1 // pred_check_branch
      %145 = sbr.rel (0) target = $region65
    $region64: #{tpu_custom_call.1} parent=1 // pred_region
      %147 = dma.done [#allocation3], 16
    $region65: #{tpu_custom_call.1} parent=1 // pred_fallthru
      _
    // Predicated region
    $region66: #{tpu_custom_call.1} parent=1 // pred_check
      _
    $region67: #{tpu_custom_call.1} parent=1 // pred_check_branch
      %149 = sbr.rel (0) target = $region69
    $region68: #{tpu_custom_call.1} parent=1 // pred_region
      %151 = dma.done [#allocation5], 1280
    $region69: #{tpu_custom_call.1} parent=1 // pred_fallthru
      _
    // Predicated region
    $region70: #{tpu_custom_call.1} parent=1 // pred_check
      _
    $region71: #{tpu_custom_call.1} parent=1 // pred_check_branch
      %153 = sbr.rel (0) target = $region73
    $region72: #{tpu_custom_call.1} parent=1 // pred_region
      %155 = dma.done [#allocation5], 16
    $region73: #{tpu_custom_call.1} parent=1 // pred_fallthru
      _
    // Predicated region
    $region74: #{tpu_custom_call.1} parent=1 // pred_check
      _
    $region75: #{tpu_custom_call.1} parent=1 // pred_check_branch
      %157 = sbr.rel (0) target = $region77
    $region76: #{tpu_custom_call.1} parent=1 // pred_region
      %159 = dma.done [#allocation8], 128
    $region77: #{tpu_custom_call.1} parent=1 // pred_fallthru
      _
    // Predicated region
    $region78: #{tpu_custom_call.1} parent=1 // pred_check
      _
    $region79: #{tpu_custom_call.1} parent=1 // pred_check_branch
      %161 = sbr.rel (0) target = $region81
    $region80: #{tpu_custom_call.1} parent=1 // pred_region
      %163 = dma.done [#allocation8], 16
    $region81: #{tpu_custom_call.1} parent=1 // pred_fallthru
      _
    // Predicated region
    $region82: #{tpu_custom_call.1} parent=1 // pred_check
      _
    $region83: #{tpu_custom_call.1} parent=1 // pred_check_branch
      %165 = sbr.rel (0) target = $region85
    $region84: #{tpu_custom_call.1} parent=1 // pred_region
      %167 = dma.done [#allocation11], 1280
    $region85: #{tpu_custom_call.1} parent=1 // pred_fallthru
      _
    // Predicated region
    $region86: #{tpu_custom_call.1} parent=1 // pred_check
      _
    $region87: #{tpu_custom_call.1} parent=1 // pred_check_branch
      %169 = sbr.rel (0) target = $region89
    $region88: #{tpu_custom_call.1} parent=1 // pred_region
      %171 = dma.done [#allocation11], 16
    $region89: #{tpu_custom_call.1} parent=1 // pred_fallthru
      _
    // Predicated region
    $region90: #{tpu_custom_call.1} parent=1 // pred_check
      _
    $region91: #{tpu_custom_call.1} parent=1 // pred_check_branch
      %173 = sbr.rel (0) target = $region93
    $region92: #{tpu_custom_call.1} parent=1 // pred_region
      %175 = dma.done [#allocation14], 1280
    $region93: #{tpu_custom_call.1} parent=1 // pred_fallthru
      _
    // Predicated region
    $region94: #{tpu_custom_call.1} parent=1 // pred_check
      _
    $region95: #{tpu_custom_call.1} parent=1 // pred_check_branch
      %177 = sbr.rel (0) target = $region97
    $region96: #{tpu_custom_call.1} parent=1 // pred_region
      %179 = dma.done [#allocation14], 256
    $region97: #{tpu_custom_call.1} parent=1 // pred_fallthru
      _
    %v180 = vld [vmem:[%s0] sm:$0xff]
    %v181 = vld [vmem:[%s0 + $0x8] sm:$0xff]
    %s182 = scalar_lea.vmem %s0, 16
    %v183 = vld [vmem:[%s182] sm:$0xff]
    %v184 = vld [vmem:[%s182 + $0x8] sm:$0xff]
    %v185 = vld [vmem:[#allocation7] sm:$0xff]
    %v186 = vld [vmem:[#allocation9] sm:$0x1]
    %v188 = vperm.slane %v186, 0
    %vm190 = vcmask 64512
    %v192 = vsel %vm190, %v180, 0
    %v195 = vsel %vm190, %v181, 0
    %v198 = vsel %vm190, %v183, 0
    %v201 = vsel %vm190, %v184, 0
    %203 = vmatpush.msra.mxu0 0.0
    %204 = vmatpush.msra.mxu0 0.0
    %205 = vmatpush.msra.mxu0 0.0
    %206 = vmatpush.msra.mxu0 0.0
    %207 = vmatpush.msra.mxu0 0.0
    %208 = vmatpush.msra.mxu0 0.0
    %209 = vmatpush.msra.mxu0 0.0
    %210 = vmatpush.msra.mxu0 0.0
    %211 = vmatpush.msra.mxu0 0.0
    %212 = vmatpush.msra.mxu0 0.0
    %213 = vmatpush.msra.mxu0 0.0
    %214 = vmatpush.msra.mxu0 0.0
    %215 = vmatpush.msra.mxu0 0.0
    %216 = vmatpush.msra.mxu0 0.0
    %217 = vmatpush.msra.mxu0 0.0
    %218 = vmatpush.msra.mxu0 %v185
    %219 = vmatmul.f32.gmra.mxu0 %v192
    %v220 = vpop.f32.mrf.mxu0
    %v221 = vadd.f32 %v188, %v220
    %222 = vmatmul.f32.gmra.mxu0 %v195
    %v223 = vpop.f32.mrf.mxu0
    %v224 = vadd.f32 %v188, %v223
    %225 = vmatmul.f32.gmra.mxu0 %v198
    %v226 = vpop.f32.mrf.mxu0
    %v227 = vadd.f32 %v188, %v226
    %228 = vmatmul.f32.gmra.mxu0 %v201
    %v229 = vpop.f32.mrf.mxu0
    %v230 = vadd.f32 %v188, %v229
    %231 = vdwg.mxu0
    %vm233 = vcmask 1041408
    %v234 = vrot.slane 0.0, 6
    %v235 = vrot.slane %v180, 6
    %v236 = vsel %vm233, %v234, %v235
    %v237 = vrot.slane %v181, 6
    %v238 = vsel %vm233, %v235, %v237
    %v239 = vrot.slane %v183, 6
    %v240 = vsel %vm233, %v234, %v239
    %v241 = vrot.slane %v184, 6
    %v242 = vsel %vm233, %v239, %v241
    %v243 = vld [vmem:[%s1] sm:$0xff]
    %vm244 = vcmask 1040384
    %v245 = vrot.slane 0.0, 7
    %v246 = vrot.slane %v180, 7
    %v247 = vsel %vm244, %v245, %v246
    %v248 = vrot.slane %v181, 7
    %v249 = vsel %vm244, %v246, %v248
    %v250 = vrot.slane %v183, 7
    %v251 = vsel %vm244, %v245, %v250
    %v252 = vrot.slane %v184, 7
    %v253 = vsel %vm244, %v250, %v252
    %s254 = scalar_lea.vmem %s1, 8
    %v255 = vld [vmem:[%s254] sm:$0xff]
    %v256 = vsel %vm190, %v247, 0
    %v258 = vsel %vm190, %v249, 0
    %v260 = vsel %vm190, %v251, 0
    %v262 = vsel %vm190, %v253, 0
    %264 = vmatpush.msra.mxu0 0.0
    %265 = vmatpush.msra.mxu0 0.0
    %266 = vmatpush.msra.mxu0 0.0
    %267 = vmatpush.msra.mxu0 0.0
    %268 = vmatpush.msra.mxu0 0.0
    %269 = vmatpush.msra.mxu0 0.0
    %270 = vmatpush.msra.mxu0 0.0
    %271 = vmatpush.msra.mxu0 0.0
    %272 = vmatpush.msra.mxu0 0.0
    %273 = vmatpush.msra.mxu0 0.0
    %274 = vmatpush.msra.mxu0 0.0
    %275 = vmatpush.msra.mxu0 0.0
    %276 = vmatpush.msra.mxu0 0.0
    %277 = vmatpush.msra.mxu0 0.0
    %278 = vmatpush.msra.mxu0 0.0
    %279 = vmatpush.msra.mxu0 %v255
    %280 = vmatmul.f32.gmra.mxu0 %v256
    %v281 = vpop.f32.mrf.mxu0
    %v282 = vadd.f32 0.0, %v281
    %283 = vmatmul.f32.gmra.mxu0 %v258
    %v284 = vpop.f32.mrf.mxu0
    %v285 = vadd.f32 0.0, %v284
    %286 = vmatmul.f32.gmra.mxu0 %v260
    %v287 = vpop.f32.mrf.mxu0
    %v288 = vadd.f32 0.0, %v287
    %289 = vmatmul.f32.gmra.mxu0 %v262
    %v290 = vpop.f32.mrf.mxu0
    %v291 = vadd.f32 0.0, %v290
    %292 = vdwg.mxu0
    %v293 = vsel %vm190, %v236, 0
    %v295 = vsel %vm190, %v238, 0
    %v297 = vsel %vm190, %v240, 0
    %v299 = vsel %vm190, %v242, 0
    %301 = vmatpush.msra.mxu0 0.0
    %302 = vmatpush.msra.mxu0 0.0
    %303 = vmatpush.msra.mxu0 0.0
    %304 = vmatpush.msra.mxu0 0.0
    %305 = vmatpush.msra.mxu0 0.0
    %306 = vmatpush.msra.mxu0 0.0
    %307 = vmatpush.msra.mxu0 0.0
    %308 = vmatpush.msra.mxu0 0.0
    %309 = vmatpush.msra.mxu0 0.0
    %310 = vmatpush.msra.mxu0 0.0
    %311 = vmatpush.msra.mxu0 0.0
    %312 = vmatpush.msra.mxu0 0.0
    %313 = vmatpush.msra.mxu0 0.0
    %314 = vmatpush.msra.mxu0 0.0
    %315 = vmatpush.msra.mxu0 0.0
    %316 = vmatpush.msra.mxu0 %v243
    %317 = vmatmul.f32.gmra.mxu0 %v293
    %v318 = vpop.f32.mrf.mxu0
    %v319 = vadd.f32 %v282, %v318
    %320 = vmatmul.f32.gmra.mxu0 %v295
    %v321 = vpop.f32.mrf.mxu0
    %v322 = vadd.f32 %v285, %v321
    %323 = vmatmul.f32.gmra.mxu0 %v297
    %v324 = vpop.f32.mrf.mxu0
    %v325 = vadd.f32 %v288, %v324
    %326 = vmatmul.f32.gmra.mxu0 %v299
    %v327 = vpop.f32.mrf.mxu0
    %v328 = vadd.f32 %v291, %v327
    %329 = vdwg.mxu0
    %s330 = scalar_lea.vmem %s1, 16
    %v331 = vld [vmem:[%s330] sm:$0xff]
    %332 = vmatpush.msra.mxu0 0.0
    %333 = vmatpush.msra.mxu0 0.0
    %334 = vmatpush.msra.mxu0 0.0
    %335 = vmatpush.msra.mxu0 0.0
    %336 = vmatpush.msra.mxu0 0.0
    %337 = vmatpush.msra.mxu0 0.0
    %338 = vmatpush.msra.mxu0 0.0
    %339 = vmatpush.msra.mxu0 0.0
    %340 = vmatpush.msra.mxu0 0.0
    %341 = vmatpush.msra.mxu0 0.0
    %342 = vmatpush.msra.mxu0 0.0
    %343 = vmatpush.msra.mxu0 0.0
    %344 = vmatpush.msra.mxu0 0.0
    %345 = vmatpush.msra.mxu0 0.0
    %346 = vmatpush.msra.mxu0 0.0
    %347 = vmatpush.msra.mxu0 %v331
    %348 = vmatmul.f32.gmra.mxu0 %v192
    %v349 = vpop.f32.mrf.mxu0
    %v350 = vadd.f32 0.0, %v349
    %351 = vmatmul.f32.gmra.mxu0 %v195
    %v352 = vpop.f32.mrf.mxu0
    %v353 = vadd.f32 0.0, %v352
    %354 = vmatmul.f32.gmra.mxu0 %v198
    %v355 = vpop.f32.mrf.mxu0
    %v356 = vadd.f32 0.0, %v355
    %357 = vmatmul.f32.gmra.mxu0 %v201
    %v358 = vpop.f32.mrf.mxu0
    %v359 = vadd.f32 0.0, %v358
    %360 = vdwg.mxu0
    %v361 = vadd.f32 %v319, %v350
    %v362 = vadd.f32 %v322, %v353
    %v363 = vadd.f32 %v325, %v356
    %v364 = vadd.f32 %v328, %v359
    %vm365 = vcmask 1046528
    %v366 = vrot.slane %v180, 1
    %v367 = vrot.slane %v181, 1
    %v368 = vsel %vm365, %v366, %v367
    %v369 = vrot.slane 0.0, 1
    %v370 = vsel %vm365, %v367, %v369
    %v371 = vrot.slane %v183, 1
    %v372 = vrot.slane %v184, 1
    %v373 = vsel %vm365, %v371, %v372
    %v374 = vsel %vm365, %v372, %v369
    %s375 = scalar_lea.vmem %s1, 24
    %v376 = vld [vmem:[%s375] sm:$0xff]
    %v377 = vsel %vm190, %v368, 0
    %v379 = vsel %vm190, %v370, 0
    %v381 = vsel %vm190, %v373, 0
    %v383 = vsel %vm190, %v374, 0
    %385 = vmatpush.msra.mxu0 0.0
    %386 = vmatpush.msra.mxu0 0.0
    %387 = vmatpush.msra.mxu0 0.0
    %388 = vmatpush.msra.mxu0 0.0
    %389 = vmatpush.msra.mxu0 0.0
    %390 = vmatpush.msra.mxu0 0.0
    %391 = vmatpush.msra.mxu0 0.0
    %392 = vmatpush.msra.mxu0 0.0
    %393 = vmatpush.msra.mxu0 0.0
    %394 = vmatpush.msra.mxu0 0.0
    %395 = vmatpush.msra.mxu0 0.0
    %396 = vmatpush.msra.mxu0 0.0
    %397 = vmatpush.msra.mxu0 0.0
    %398 = vmatpush.msra.mxu0 0.0
    %399 = vmatpush.msra.mxu0 0.0
    %400 = vmatpush.msra.mxu0 %v376
    %401 = vmatmul.f32.gmra.mxu0 %v377
    %v402 = vpop.f32.mrf.mxu0
    %v403 = vadd.f32 0.0, %v402
    %404 = vmatmul.f32.gmra.mxu0 %v379
    %v405 = vpop.f32.mrf.mxu0
    %v406 = vadd.f32 0.0, %v405
    %407 = vmatmul.f32.gmra.mxu0 %v381
    %v408 = vpop.f32.mrf.mxu0
    %v409 = vadd.f32 0.0, %v408
    %410 = vmatmul.f32.gmra.mxu0 %v383
    %v411 = vpop.f32.mrf.mxu0
    %v412 = vadd.f32 0.0, %v411
    %413 = vdwg.mxu0
    %v414 = vadd.f32 %v361, %v403
    %v415 = vadd.f32 %v362, %v406
    %v416 = vadd.f32 %v363, %v409
    %v417 = vadd.f32 %v364, %v412
    %vm418 = vcmask 1045504
    %v419 = vrot.slane %v180, 2
    %v420 = vrot.slane %v181, 2
    %v421 = vsel %vm418, %v419, %v420
    %v422 = vrot.slane 0.0, 2
    %v423 = vsel %vm418, %v420, %v422
    %v424 = vrot.slane %v183, 2
    %v425 = vrot.slane %v184, 2
    %v426 = vsel %vm418, %v424, %v425
    %v427 = vsel %vm418, %v425, %v422
    %s428 = scalar_lea.vmem %s1, 32
    %v429 = vld [vmem:[%s428] sm:$0xff]
    %v430 = vsel %vm190, %v421, 0
    %v432 = vsel %vm190, %v423, 0
    %v434 = vsel %vm190, %v426, 0
    %v436 = vsel %vm190, %v427, 0
    %438 = vmatpush.msra.mxu0 0.0
    %439 = vmatpush.msra.mxu0 0.0
    %440 = vmatpush.msra.mxu0 0.0
    %441 = vmatpush.msra.mxu0 0.0
    %442 = vmatpush.msra.mxu0 0.0
    %443 = vmatpush.msra.mxu0 0.0
    %444 = vmatpush.msra.mxu0 0.0
    %445 = vmatpush.msra.mxu0 0.0
    %446 = vmatpush.msra.mxu0 0.0
    %447 = vmatpush.msra.mxu0 0.0
    %448 = vmatpush.msra.mxu0 0.0
    %449 = vmatpush.msra.mxu0 0.0
    %450 = vmatpush.msra.mxu0 0.0
    %451 = vmatpush.msra.mxu0 0.0
    %452 = vmatpush.msra.mxu0 0.0
    %453 = vmatpush.msra.mxu0 %v429
    %454 = vmatmul.f32.gmra.mxu0 %v430
    %v455 = vpop.f32.mrf.mxu0
    %v456 = vadd.f32 0.0, %v455
    %457 = vmatmul.f32.gmra.mxu0 %v432
    %v458 = vpop.f32.mrf.mxu0
    %v459 = vadd.f32 0.0, %v458
    %460 = vmatmul.f32.gmra.mxu0 %v434
    %v461 = vpop.f32.mrf.mxu0
    %v462 = vadd.f32 0.0, %v461
    %463 = vmatmul.f32.gmra.mxu0 %v436
    %v464 = vpop.f32.mrf.mxu0
    %v465 = vadd.f32 0.0, %v464
    %466 = vdwg.mxu0
    %v467 = vadd.f32 %v414, %v456
    %v468 = vadd.f32 %v415, %v459
    %v469 = vadd.f32 %v416, %v462
    %v470 = vadd.f32 %v417, %v465
    %v471 = vld [vmem:[#allocation2] sm:$0x1]
    %v473 = vperm.slane %v471, 0
    %v475 = vadd.f32 %v467, %v473
    %v476 = vadd.f32 %v468, %v473
    %v477 = vadd.f32 %v469, %v473
    %v478 = vadd.f32 %v470, %v473
    %v479 = vmax.f32 %v475, 0.0
    %v480 = vmax.f32 %v476, 0.0
    %v481 = vmax.f32 %v477, 0.0
    %v482 = vmax.f32 %v478, 0.0
    %v485 = vrot.slane %v479, 6
    %v486 = vsel %vm233, %v234, %v485
    %v487 = vrot.slane %v480, 6
    %v488 = vsel %vm233, %v485, %v487
    %v491 = vrot.slane %v481, 6
    %v492 = vsel %vm233, %v234, %v491
    %v493 = vrot.slane %v482, 6
    %v494 = vsel %vm233, %v491, %v493
    %v495 = vld [vmem:[#allocation4] sm:$0xff]
    %v496 = vld [vmem:[#allocation4 + $0x8] sm:$0xff]
    %v497 = vrot.slane %v479, 7
    %v498 = vsel %vm244, %v245, %v497
    %v499 = vrot.slane %v480, 7
    %v500 = vsel %vm244, %v497, %v499
    %v501 = vrot.slane %v481, 7
    %v502 = vsel %vm244, %v245, %v501
    %v503 = vrot.slane %v482, 7
    %v504 = vsel %vm244, %v501, %v503
    %s505 = scalar_lea.vmem [#allocation4], 16
    %v506 = vld [vmem:[%s505] sm:$0xff]
    %v507 = vld [vmem:[%s505 + $0x8] sm:$0xff]
    %vm508 = vcmask 130048
    %v509 = vsel %vm508, %v498, 0
    %v511 = vsel %vm508, %v500, 0
    %v513 = vsel %vm508, %v502, 0
    %v515 = vsel %vm508, %v504, 0
    %517 = vmatpush.msra.mxu0 0.0
    %518 = vmatpush.msra.mxu0 0.0
    %519 = vmatpush.msra.mxu0 0.0
    %520 = vmatpush.msra.mxu0 0.0
    %521 = vmatpush.msra.mxu0 0.0
    %522 = vmatpush.msra.mxu0 0.0
    %523 = vmatpush.msra.mxu0 0.0
    %524 = vmatpush.msra.mxu0 0.0
    %525 = vmatpush.msra.mxu0 0.0
    %526 = vmatpush.msra.mxu0 0.0
    %527 = vmatpush.msra.mxu0 0.0
    %528 = vmatpush.msra.mxu0 0.0
    %529 = vmatpush.msra.mxu0 0.0
    %530 = vmatpush.msra.mxu0 0.0
    %531 = vmatpush.msra.mxu0 %v507
    %532 = vmatpush.msra.mxu0 %v506
    %533 = vmatmul.f32.gmra.mxu0 %v509
    %v534 = vpop.f32.mrf.mxu0
    %v535 = vadd.f32 0.0, %v534
    %536 = vmatmul.f32.gmra.mxu0 %v511
    %v537 = vpop.f32.mrf.mxu0
    %v538 = vadd.f32 0.0, %v537
    %539 = vmatmul.f32.gmra.mxu0 %v513
    %v540 = vpop.f32.mrf.mxu0
    %v541 = vadd.f32 0.0, %v540
    %542 = vmatmul.f32.gmra.mxu0 %v515
    %v543 = vpop.f32.mrf.mxu0
    %v544 = vadd.f32 0.0, %v543
    %545 = vdwg.mxu0
    %v546 = vsel %vm508, %v486, 0
    %v548 = vsel %vm508, %v488, 0
    %v550 = vsel %vm508, %v492, 0
    %v552 = vsel %vm508, %v494, 0
    %554 = vmatpush.msra.mxu0 0.0
    %555 = vmatpush.msra.mxu0 0.0
    %556 = vmatpush.msra.mxu0 0.0
    %557 = vmatpush.msra.mxu0 0.0
    %558 = vmatpush.msra.mxu0 0.0
    %559 = vmatpush.msra.mxu0 0.0
    %560 = vmatpush.msra.mxu0 0.0
    %561 = vmatpush.msra.mxu0 0.0
    %562 = vmatpush.msra.mxu0 0.0
    %563 = vmatpush.msra.mxu0 0.0
    %564 = vmatpush.msra.mxu0 0.0
    %565 = vmatpush.msra.mxu0 0.0
    %566 = vmatpush.msra.mxu0 0.0
    %567 = vmatpush.msra.mxu0 0.0
    %568 = vmatpush.msra.mxu0 %v496
    %569 = vmatpush.msra.mxu0 %v495
    %570 = vmatmul.f32.gmra.mxu0 %v546
    %v571 = vpop.f32.mrf.mxu0
    %v572 = vadd.f32 %v535, %v571
    %573 = vmatmul.f32.gmra.mxu0 %v548
    %v574 = vpop.f32.mrf.mxu0
    %v575 = vadd.f32 %v538, %v574
    %576 = vmatmul.f32.gmra.mxu0 %v550
    %v577 = vpop.f32.mrf.mxu0
    %v578 = vadd.f32 %v541, %v577
    %579 = vmatmul.f32.gmra.mxu0 %v552
    %v580 = vpop.f32.mrf.mxu0
    %v581 = vadd.f32 %v544, %v580
    %582 = vdwg.mxu0
    %s583 = scalar_lea.vmem [#allocation4], 32
    %v584 = vld [vmem:[%s583] sm:$0xff]
    %v585 = vld [vmem:[%s583 + $0x8] sm:$0xff]
    %v586 = vsel %vm508, %v479, 0
    %v588 = vsel %vm508, %v480, 0
    %v590 = vsel %vm508, %v481, 0
    %v592 = vsel %vm508, %v482, 0
    %594 = vmatpush.msra.mxu0 0.0
    %595 = vmatpush.msra.mxu0 0.0
    %596 = vmatpush.msra.mxu0 0.0
    %597 = vmatpush.msra.mxu0 0.0
    %598 = vmatpush.msra.mxu0 0.0
    %599 = vmatpush.msra.mxu0 0.0
    %600 = vmatpush.msra.mxu0 0.0
    %601 = vmatpush.msra.mxu0 0.0
    %602 = vmatpush.msra.mxu0 0.0
    %603 = vmatpush.msra.mxu0 0.0
    %604 = vmatpush.msra.mxu0 0.0
    %605 = vmatpush.msra.mxu0 0.0
    %606 = vmatpush.msra.mxu0 0.0
    %607 = vmatpush.msra.mxu0 0.0
    %608 = vmatpush.msra.mxu0 %v585
    %609 = vmatpush.msra.mxu0 %v584
    %610 = vmatmul.f32.gmra.mxu0 %v586
    %v611 = vpop.f32.mrf.mxu0
    %v612 = vadd.f32 0.0, %v611
    %613 = vmatmul.f32.gmra.mxu0 %v588
    %v614 = vpop.f32.mrf.mxu0
    %v615 = vadd.f32 0.0, %v614
    %616 = vmatmul.f32.gmra.mxu0 %v590
    %v617 = vpop.f32.mrf.mxu0
    %v618 = vadd.f32 0.0, %v617
    %619 = vmatmul.f32.gmra.mxu0 %v592
    %v620 = vpop.f32.mrf.mxu0
    %v621 = vadd.f32 0.0, %v620
    %622 = vdwg.mxu0
    %v623 = vadd.f32 %v572, %v612
    %v624 = vadd.f32 %v575, %v615
    %v625 = vadd.f32 %v578, %v618
    %v626 = vadd.f32 %v581, %v621
    %v627 = vrot.slane %v479, 1
    %v628 = vrot.slane %v480, 1
    %v629 = vsel %vm365, %v627, %v628
    %v630 = vsel %vm365, %v628, %v369
    %v631 = vrot.slane %v481, 1
    %v632 = vrot.slane %v482, 1
    %v633 = vsel %vm365, %v631, %v632
    %v634 = vsel %vm365, %v632, %v369
    %s635 = scalar_lea.vmem [#allocation4], 48
    %v636 = vld [vmem:[%s635] sm:$0xff]
    %v637 = vld [vmem:[%s635 + $0x8] sm:$0xff]
    %v638 = vsel %vm508, %v629, 0
    %v640 = vsel %vm508, %v630, 0
    %v642 = vsel %vm508, %v633, 0
    %v644 = vsel %vm508, %v634, 0
    %646 = vmatpush.msra.mxu0 0.0
    %647 = vmatpush.msra.mxu0 0.0
    %648 = vmatpush.msra.mxu0 0.0
    %649 = vmatpush.msra.mxu0 0.0
    %650 = vmatpush.msra.mxu0 0.0
    %651 = vmatpush.msra.mxu0 0.0
    %652 = vmatpush.msra.mxu0 0.0
    %653 = vmatpush.msra.mxu0 0.0
    %654 = vmatpush.msra.mxu0 0.0
    %655 = vmatpush.msra.mxu0 0.0
    %656 = vmatpush.msra.mxu0 0.0
    %657 = vmatpush.msra.mxu0 0.0
    %658 = vmatpush.msra.mxu0 0.0
    %659 = vmatpush.msra.mxu0 0.0
    %660 = vmatpush.msra.mxu0 %v637
    %661 = vmatpush.msra.mxu0 %v636
    %662 = vmatmul.f32.gmra.mxu0 %v638
    %v663 = vpop.f32.mrf.mxu0
    %v664 = vadd.f32 0.0, %v663
    %665 = vmatmul.f32.gmra.mxu0 %v640
    %v666 = vpop.f32.mrf.mxu0
    %v667 = vadd.f32 0.0, %v666
    %668 = vmatmul.f32.gmra.mxu0 %v642
    %v669 = vpop.f32.mrf.mxu0
    %v670 = vadd.f32 0.0, %v669
    %671 = vmatmul.f32.gmra.mxu0 %v644
    %v672 = vpop.f32.mrf.mxu0
    %v673 = vadd.f32 0.0, %v672
    %674 = vdwg.mxu0
    %v675 = vadd.f32 %v623, %v664
    %v676 = vadd.f32 %v624, %v667
    %v677 = vadd.f32 %v625, %v670
    %v678 = vadd.f32 %v626, %v673
    %v679 = vrot.slane %v479, 2
    %v680 = vrot.slane %v480, 2
    %v681 = vsel %vm418, %v679, %v680
    %v682 = vsel %vm418, %v680, %v422
    %v683 = vrot.slane %v481, 2
    %v684 = vrot.slane %v482, 2
    %v685 = vsel %vm418, %v683, %v684
    %v686 = vsel %vm418, %v684, %v422
    %s687 = scalar_lea.vmem [#allocation4], 64
    %v688 = vld [vmem:[%s687] sm:$0xff]
    %v689 = vld [vmem:[%s687 + $0x8] sm:$0xff]
    %v690 = vsel %vm508, %v681, 0
    %v692 = vsel %vm508, %v682, 0
    %v694 = vsel %vm508, %v685, 0
    %v696 = vsel %vm508, %v686, 0
    %698 = vmatpush.msra.mxu0 0.0
    %699 = vmatpush.msra.mxu0 0.0
    %700 = vmatpush.msra.mxu0 0.0
    %701 = vmatpush.msra.mxu0 0.0
    %702 = vmatpush.msra.mxu0 0.0
    %703 = vmatpush.msra.mxu0 0.0
    %704 = vmatpush.msra.mxu0 0.0
    %705 = vmatpush.msra.mxu0 0.0
    %706 = vmatpush.msra.mxu0 0.0
    %707 = vmatpush.msra.mxu0 0.0
    %708 = vmatpush.msra.mxu0 0.0
    %709 = vmatpush.msra.mxu0 0.0
    %710 = vmatpush.msra.mxu0 0.0
    %711 = vmatpush.msra.mxu0 0.0
    %712 = vmatpush.msra.mxu0 %v689
    %713 = vmatpush.msra.mxu0 %v688
    %714 = vmatmul.f32.gmra.mxu0 %v690
    %v715 = vpop.f32.mrf.mxu0
    %v716 = vadd.f32 0.0, %v715
    %717 = vmatmul.f32.gmra.mxu0 %v692
    %v718 = vpop.f32.mrf.mxu0
    %v719 = vadd.f32 0.0, %v718
    %720 = vmatmul.f32.gmra.mxu0 %v694
    %v721 = vpop.f32.mrf.mxu0
    %v722 = vadd.f32 0.0, %v721
    %723 = vmatmul.f32.gmra.mxu0 %v696
    %v724 = vpop.f32.mrf.mxu0
    %v725 = vadd.f32 0.0, %v724
    %726 = vdwg.mxu0
    %v727 = vadd.f32 %v675, %v716
    %v728 = vadd.f32 %v676, %v719
    %v729 = vadd.f32 %v677, %v722
    %v730 = vadd.f32 %v678, %v725
    %v731 = vld [vmem:[#allocation6] sm:$0x1]
    %v733 = vperm.slane %v731, 0
    %v735 = vadd.f32 %v727, %v733
    %v736 = vadd.f32 %v728, %v733
    %v737 = vadd.f32 %v729, %v733
    %v738 = vadd.f32 %v730, %v733
    %v739 = vmax.f32 %v735, 0.0
    %v740 = vmax.f32 %v736, 0.0
    %v741 = vmax.f32 %v737, 0.0
    %v742 = vmax.f32 %v738, 0.0
    %v743 = vadd.f32 %v739, %v221
    %v744 = vadd.f32 %v740, %v224
    %v745 = vadd.f32 %v741, %v227
    %v746 = vadd.f32 %v742, %v230
    %v747 = vmax.f32 %v743, 0.0
    %v748 = vmax.f32 %v744, 0.0
    %v749 = vmax.f32 %v745, 0.0
    %v750 = vmax.f32 %v746, 0.0
    %v751 = vld [vmem:[%s11] sm:$0xff]
    %v752 = vld [vmem:[%s11 + $0x8] sm:$0xff]
    %v753 = vld [vmem:[%s12] sm:$0x1]
    %v755 = vperm.slane %v753, 0
    %v758 = vsel %vm508, %v747, 0
    %v761 = vsel %vm508, %v748, 0
    %v764 = vsel %vm508, %v749, 0
    %v767 = vsel %vm508, %v750, 0
    %769 = vmatpush.msra.mxu0 0.0
    %770 = vmatpush.msra.mxu0 0.0
    %771 = vmatpush.msra.mxu0 0.0
    %772 = vmatpush.msra.mxu0 0.0
    %773 = vmatpush.msra.mxu0 0.0
    %774 = vmatpush.msra.mxu0 0.0
    %775 = vmatpush.msra.mxu0 0.0
    %776 = vmatpush.msra.mxu0 0.0
    %777 = vmatpush.msra.mxu0 0.0
    %778 = vmatpush.msra.mxu0 0.0
    %779 = vmatpush.msra.mxu0 0.0
    %780 = vmatpush.msra.mxu0 0.0
    %781 = vmatpush.msra.mxu0 0.0
    %782 = vmatpush.msra.mxu0 0.0
    %783 = vmatpush.msra.mxu0 %v752
    %784 = vmatpush.msra.mxu0 %v751
    %785 = vmatmul.f32.gmra.mxu0 %v758
    %v786 = vpop.f32.mrf.mxu0
    %v787 = vadd.f32 %v755, %v786
    %788 = vmatmul.f32.gmra.mxu0 %v761
    %v789 = vpop.f32.mrf.mxu0
    %v790 = vadd.f32 %v755, %v789
    %791 = vmatmul.f32.gmra.mxu0 %v764
    %v792 = vpop.f32.mrf.mxu0
    %v793 = vadd.f32 %v755, %v792
    %794 = vmatmul.f32.gmra.mxu0 %v767
    %v795 = vpop.f32.mrf.mxu0
    %v796 = vadd.f32 %v755, %v795
    %797 = vdwg.mxu0
    %vm798 = vcmask 1043456
    %v799 = vrot.slane 0.0, 4
    %v800 = vrot.slane %v747, 4
    %v801 = vsel %vm798, %v799, %v800
    %v802 = vrot.slane %v748, 4
    %v803 = vsel %vm798, %v800, %v802
    %v804 = vrot.slane %v749, 4
    %v805 = vsel %vm798, %v799, %v804
    %v806 = vrot.slane %v750, 4
    %v807 = vsel %vm798, %v804, %v806
    %v808 = vld [vmem:[#allocation10] sm:$0xff]
    %v809 = vld [vmem:[#allocation10 + $0x8] sm:$0xff]
    %v810 = vrot.slane %v747, 6
    %v811 = vsel %vm233, %v234, %v810
    %v812 = vrot.slane %v748, 6
    %v813 = vsel %vm233, %v810, %v812
    %v814 = vrot.slane %v749, 6
    %v815 = vsel %vm233, %v234, %v814
    %v816 = vrot.slane %v750, 6
    %v817 = vsel %vm233, %v814, %v816
    %s818 = scalar_lea.vmem [#allocation10], 16
    %v819 = vld [vmem:[%s818] sm:$0xff]
    %v820 = vld [vmem:[%s818 + $0x8] sm:$0xff]
    %v821 = vsel %vm508, %v811, 0
    %v823 = vsel %vm508, %v813, 0
    %v825 = vsel %vm508, %v815, 0
    %v827 = vsel %vm508, %v817, 0
    %829 = vmatpush.msra.mxu0 0.0
    %830 = vmatpush.msra.mxu0 0.0
    %831 = vmatpush.msra.mxu0 0.0
    %832 = vmatpush.msra.mxu0 0.0
    %833 = vmatpush.msra.mxu0 0.0
    %834 = vmatpush.msra.mxu0 0.0
    %835 = vmatpush.msra.mxu0 0.0
    %836 = vmatpush.msra.mxu0 0.0
    %837 = vmatpush.msra.mxu0 0.0
    %838 = vmatpush.msra.mxu0 0.0
    %839 = vmatpush.msra.mxu0 0.0
    %840 = vmatpush.msra.mxu0 0.0
    %841 = vmatpush.msra.mxu0 0.0
    %842 = vmatpush.msra.mxu0 0.0
    %843 = vmatpush.msra.mxu0 %v820
    %844 = vmatpush.msra.mxu0 %v819
    %845 = vmatmul.f32.gmra.mxu0 %v821
    %v846 = vpop.f32.mrf.mxu0
    %v847 = vadd.f32 0.0, %v846
    %848 = vmatmul.f32.gmra.mxu0 %v823
    %v849 = vpop.f32.mrf.mxu0
    %v850 = vadd.f32 0.0, %v849
    %851 = vmatmul.f32.gmra.mxu0 %v825
    %v852 = vpop.f32.mrf.mxu0
    %v853 = vadd.f32 0.0, %v852
    %854 = vmatmul.f32.gmra.mxu0 %v827
    %v855 = vpop.f32.mrf.mxu0
    %v856 = vadd.f32 0.0, %v855
    %857 = vdwg.mxu0
    %v858 = vsel %vm508, %v801, 0
    %v860 = vsel %vm508, %v803, 0
    %v862 = vsel %vm508, %v805, 0
    %v864 = vsel %vm508, %v807, 0
    %866 = vmatpush.msra.mxu0 0.0
    %867 = vmatpush.msra.mxu0 0.0
    %868 = vmatpush.msra.mxu0 0.0
    %869 = vmatpush.msra.mxu0 0.0
    %870 = vmatpush.msra.mxu0 0.0
    %871 = vmatpush.msra.mxu0 0.0
    %872 = vmatpush.msra.mxu0 0.0
    %873 = vmatpush.msra.mxu0 0.0
    %874 = vmatpush.msra.mxu0 0.0
    %875 = vmatpush.msra.mxu0 0.0
    %876 = vmatpush.msra.mxu0 0.0
    %877 = vmatpush.msra.mxu0 0.0
    %878 = vmatpush.msra.mxu0 0.0
    %879 = vmatpush.msra.mxu0 0.0
    %880 = vmatpush.msra.mxu0 %v809
    %881 = vmatpush.msra.mxu0 %v808
    %882 = vmatmul.f32.gmra.mxu0 %v858
    %v883 = vpop.f32.mrf.mxu0
    %v884 = vadd.f32 %v847, %v883
    %885 = vmatmul.f32.gmra.mxu0 %v860
    %v886 = vpop.f32.mrf.mxu0
    %v887 = vadd.f32 %v850, %v886
    %888 = vmatmul.f32.gmra.mxu0 %v862
    %v889 = vpop.f32.mrf.mxu0
    %v890 = vadd.f32 %v853, %v889
    %891 = vmatmul.f32.gmra.mxu0 %v864
    %v892 = vpop.f32.mrf.mxu0
    %v893 = vadd.f32 %v856, %v892
    %894 = vdwg.mxu0
    %s895 = scalar_lea.vmem [#allocation10], 32
    %v896 = vld [vmem:[%s895] sm:$0xff]
    %v897 = vld [vmem:[%s895 + $0x8] sm:$0xff]
    %898 = vmatpush.msra.mxu0 0.0
    %899 = vmatpush.msra.mxu0 0.0
    %900 = vmatpush.msra.mxu0 0.0
    %901 = vmatpush.msra.mxu0 0.0
    %902 = vmatpush.msra.mxu0 0.0
    %903 = vmatpush.msra.mxu0 0.0
    %904 = vmatpush.msra.mxu0 0.0
    %905 = vmatpush.msra.mxu0 0.0
    %906 = vmatpush.msra.mxu0 0.0
    %907 = vmatpush.msra.mxu0 0.0
    %908 = vmatpush.msra.mxu0 0.0
    %909 = vmatpush.msra.mxu0 0.0
    %910 = vmatpush.msra.mxu0 0.0
    %911 = vmatpush.msra.mxu0 0.0
    %912 = vmatpush.msra.mxu0 %v897
    %913 = vmatpush.msra.mxu0 %v896
    %914 = vmatmul.f32.gmra.mxu0 %v758
    %v915 = vpop.f32.mrf.mxu0
    %v916 = vadd.f32 0.0, %v915
    %917 = vmatmul.f32.gmra.mxu0 %v761
    %v918 = vpop.f32.mrf.mxu0
    %v919 = vadd.f32 0.0, %v918
    %920 = vmatmul.f32.gmra.mxu0 %v764
    %v921 = vpop.f32.mrf.mxu0
    %v922 = vadd.f32 0.0, %v921
    %923 = vmatmul.f32.gmra.mxu0 %v767
    %v924 = vpop.f32.mrf.mxu0
    %v925 = vadd.f32 0.0, %v924
    %926 = vdwg.mxu0
    %v927 = vadd.f32 %v884, %v916
    %v928 = vadd.f32 %v887, %v919
    %v929 = vadd.f32 %v890, %v922
    %v930 = vadd.f32 %v893, %v925
    %v931 = vrot.slane %v747, 2
    %v932 = vrot.slane %v748, 2
    %v933 = vsel %vm418, %v931, %v932
    %v934 = vsel %vm418, %v932, %v422
    %v935 = vrot.slane %v749, 2
    %v936 = vrot.slane %v750, 2
    %v937 = vsel %vm418, %v935, %v936
    %v938 = vsel %vm418, %v936, %v422
    %s939 = scalar_lea.vmem [#allocation10], 48
    %v940 = vld [vmem:[%s939] sm:$0xff]
    %v941 = vld [vmem:[%s939 + $0x8] sm:$0xff]
    %v942 = vsel %vm508, %v933, 0
    %v944 = vsel %vm508, %v934, 0
    %v946 = vsel %vm508, %v937, 0
    %v948 = vsel %vm508, %v938, 0
    %950 = vmatpush.msra.mxu0 0.0
    %951 = vmatpush.msra.mxu0 0.0
    %952 = vmatpush.msra.mxu0 0.0
    %953 = vmatpush.msra.mxu0 0.0
    %954 = vmatpush.msra.mxu0 0.0
    %955 = vmatpush.msra.mxu0 0.0
    %956 = vmatpush.msra.mxu0 0.0
    %957 = vmatpush.msra.mxu0 0.0
    %958 = vmatpush.msra.mxu0 0.0
    %959 = vmatpush.msra.mxu0 0.0
    %960 = vmatpush.msra.mxu0 0.0
    %961 = vmatpush.msra.mxu0 0.0
    %962 = vmatpush.msra.mxu0 0.0
    %963 = vmatpush.msra.mxu0 0.0
    %964 = vmatpush.msra.mxu0 %v941
    %965 = vmatpush.msra.mxu0 %v940
    %966 = vmatmul.f32.gmra.mxu0 %v942
    %v967 = vpop.f32.mrf.mxu0
    %v968 = vadd.f32 0.0, %v967
    %969 = vmatmul.f32.gmra.mxu0 %v944
    %v970 = vpop.f32.mrf.mxu0
    %v971 = vadd.f32 0.0, %v970
    %972 = vmatmul.f32.gmra.mxu0 %v946
    %v973 = vpop.f32.mrf.mxu0
    %v974 = vadd.f32 0.0, %v973
    %975 = vmatmul.f32.gmra.mxu0 %v948
    %v976 = vpop.f32.mrf.mxu0
    %v977 = vadd.f32 0.0, %v976
    %978 = vdwg.mxu0
    %v979 = vadd.f32 %v927, %v968
    %v980 = vadd.f32 %v928, %v971
    %v981 = vadd.f32 %v929, %v974
    %v982 = vadd.f32 %v930, %v977
    %v983 = vsel %vm798, %v802, %v799
    %v984 = vsel %vm798, %v806, %v799
    %s985 = scalar_lea.vmem [#allocation10], 64
    %v986 = vld [vmem:[%s985] sm:$0xff]
    %v987 = vld [vmem:[%s985 + $0x8] sm:$0xff]
    %v988 = vsel %vm508, %v983, 0
    %v990 = vsel %vm508, %v984, 0
    %992 = vmatpush.msra.mxu0 0.0
    %993 = vmatpush.msra.mxu0 0.0
    %994 = vmatpush.msra.mxu0 0.0
    %995 = vmatpush.msra.mxu0 0.0
    %996 = vmatpush.msra.mxu0 0.0
    %997 = vmatpush.msra.mxu0 0.0
    %998 = vmatpush.msra.mxu0 0.0
    %999 = vmatpush.msra.mxu0 0.0
    %1000 = vmatpush.msra.mxu0 0.0
    %1001 = vmatpush.msra.mxu0 0.0
    %1002 = vmatpush.msra.mxu0 0.0
    %1003 = vmatpush.msra.mxu0 0.0
    %1004 = vmatpush.msra.mxu0 0.0
    %1005 = vmatpush.msra.mxu0 0.0
    %1006 = vmatpush.msra.mxu0 %v987
    %1007 = vmatpush.msra.mxu0 %v986
    %1008 = vmatmul.f32.gmra.mxu0 %v860
    %v1009 = vpop.f32.mrf.mxu0
    %v1010 = vadd.f32 0.0, %v1009
    %1011 = vmatmul.f32.gmra.mxu0 %v988
    %v1012 = vpop.f32.mrf.mxu0
    %v1013 = vadd.f32 0.0, %v1012
    %1014 = vmatmul.f32.gmra.mxu0 %v864
    %v1015 = vpop.f32.mrf.mxu0
    %v1016 = vadd.f32 0.0, %v1015
    %1017 = vmatmul.f32.gmra.mxu0 %v990
    %v1018 = vpop.f32.mrf.mxu0
    %v1019 = vadd.f32 0.0, %v1018
    %1020 = vdwg.mxu0
    %v1021 = vadd.f32 %v979, %v1010
    %v1022 = vadd.f32 %v980, %v1013
    %v1023 = vadd.f32 %v981, %v1016
    %v1024 = vadd.f32 %v982, %v1019
    %v1025 = vld [vmem:[#allocation12] sm:$0x1]
    %v1027 = vperm.slane %v1025, 0
    %v1029 = vadd.f32 %v1021, %v1027
    %v1030 = vadd.f32 %v1022, %v1027
    %v1031 = vadd.f32 %v1023, %v1027
    %v1032 = vadd.f32 %v1024, %v1027
    %v1033 = vmax.f32 %v1029, 0.0
    %v1034 = vmax.f32 %v1030, 0.0
    %v1035 = vmax.f32 %v1031, 0.0
    %v1036 = vmax.f32 %v1032, 0.0
    %v1039 = vrot.slane %v1033, 4
    %v1040 = vsel %vm798, %v799, %v1039
    %v1041 = vrot.slane %v1034, 4
    %v1042 = vsel %vm798, %v1039, %v1041
    %v1045 = vrot.slane %v1035, 4
    %v1046 = vsel %vm798, %v799, %v1045
    %v1047 = vrot.slane %v1036, 4
    %v1048 = vsel %vm798, %v1045, %v1047
    %v1049 = vld [vmem:[#allocation13] sm:$0xff]
    %v1050 = vld [vmem:[#allocation13 + $0x8] sm:$0xff]
    %v1051 = vrot.slane %v1033, 6
    %v1052 = vsel %vm233, %v234, %v1051
    %v1053 = vrot.slane %v1034, 6
    %v1054 = vsel %vm233, %v1051, %v1053
    %v1055 = vrot.slane %v1035, 6
    %v1056 = vsel %vm233, %v234, %v1055
    %v1057 = vrot.slane %v1036, 6
    %v1058 = vsel %vm233, %v1055, %v1057
    %s1059 = scalar_lea.vmem [#allocation13], 16
    %v1060 = vld [vmem:[%s1059] sm:$0xff]
    %v1061 = vld [vmem:[%s1059 + $0x8] sm:$0xff]
    %v1062 = vsel %vm508, %v1052, 0
    %v1064 = vsel %vm508, %v1054, 0
    %v1066 = vsel %vm508, %v1056, 0
    %v1068 = vsel %vm508, %v1058, 0
    %1070 = vmatpush.msra.mxu0 0.0
    %1071 = vmatpush.msra.mxu0 0.0
    %1072 = vmatpush.msra.mxu0 0.0
    %1073 = vmatpush.msra.mxu0 0.0
    %1074 = vmatpush.msra.mxu0 0.0
    %1075 = vmatpush.msra.mxu0 0.0
    %1076 = vmatpush.msra.mxu0 0.0
    %1077 = vmatpush.msra.mxu0 0.0
    %1078 = vmatpush.msra.mxu0 0.0
    %1079 = vmatpush.msra.mxu0 0.0
    %1080 = vmatpush.msra.mxu0 0.0
    %1081 = vmatpush.msra.mxu0 0.0
    %1082 = vmatpush.msra.mxu0 0.0
    %1083 = vmatpush.msra.mxu0 0.0
    %1084 = vmatpush.msra.mxu0 %v1061
    %1085 = vmatpush.msra.mxu0 %v1060
    %1086 = vmatmul.f32.gmra.mxu0 %v1062
    %v1087 = vpop.f32.mrf.mxu0
    %v1088 = vadd.f32 0.0, %v1087
    %1089 = vmatmul.f32.gmra.mxu0 %v1064
    %v1090 = vpop.f32.mrf.mxu0
    %v1091 = vadd.f32 0.0, %v1090
    %1092 = vmatmul.f32.gmra.mxu0 %v1066
    %v1093 = vpop.f32.mrf.mxu0
    %v1094 = vadd.f32 0.0, %v1093
    %1095 = vmatmul.f32.gmra.mxu0 %v1068
    %v1096 = vpop.f32.mrf.mxu0
    %v1097 = vadd.f32 0.0, %v1096
    %1098 = vdwg.mxu0
    %v1099 = vsel %vm508, %v1040, 0
    %v1101 = vsel %vm508, %v1042, 0
    %v1103 = vsel %vm508, %v1046, 0
    %v1105 = vsel %vm508, %v1048, 0
    %1107 = vmatpush.msra.mxu0 0.0
    %1108 = vmatpush.msra.mxu0 0.0
    %1109 = vmatpush.msra.mxu0 0.0
    %1110 = vmatpush.msra.mxu0 0.0
    %1111 = vmatpush.msra.mxu0 0.0
    %1112 = vmatpush.msra.mxu0 0.0
    %1113 = vmatpush.msra.mxu0 0.0
    %1114 = vmatpush.msra.mxu0 0.0
    %1115 = vmatpush.msra.mxu0 0.0
    %1116 = vmatpush.msra.mxu0 0.0
    %1117 = vmatpush.msra.mxu0 0.0
    %1118 = vmatpush.msra.mxu0 0.0
    %1119 = vmatpush.msra.mxu0 0.0
    %1120 = vmatpush.msra.mxu0 0.0
    %1121 = vmatpush.msra.mxu0 %v1050
    %1122 = vmatpush.msra.mxu0 %v1049
    %1123 = vmatmul.f32.gmra.mxu0 %v1099
    %v1124 = vpop.f32.mrf.mxu0
    %v1125 = vadd.f32 %v1088, %v1124
    %1126 = vmatmul.f32.gmra.mxu0 %v1101
    %v1127 = vpop.f32.mrf.mxu0
    %v1128 = vadd.f32 %v1091, %v1127
    %1129 = vmatmul.f32.gmra.mxu0 %v1103
    %v1130 = vpop.f32.mrf.mxu0
    %v1131 = vadd.f32 %v1094, %v1130
    %1132 = vmatmul.f32.gmra.mxu0 %v1105
    %v1133 = vpop.f32.mrf.mxu0
    %v1134 = vadd.f32 %v1097, %v1133
    %1135 = vdwg.mxu0
    %s1136 = scalar_lea.vmem [#allocation13], 32
    %v1137 = vld [vmem:[%s1136] sm:$0xff]
    %v1138 = vld [vmem:[%s1136 + $0x8] sm:$0xff]
    %v1139 = vsel %vm508, %v1033, 0
    %v1141 = vsel %vm508, %v1034, 0
    %v1143 = vsel %vm508, %v1035, 0
    %v1145 = vsel %vm508, %v1036, 0
    %1147 = vmatpush.msra.mxu0 0.0
    %1148 = vmatpush.msra.mxu0 0.0
    %1149 = vmatpush.msra.mxu0 0.0
    %1150 = vmatpush.msra.mxu0 0.0
    %1151 = vmatpush.msra.mxu0 0.0
    %1152 = vmatpush.msra.mxu0 0.0
    %1153 = vmatpush.msra.mxu0 0.0
    %1154 = vmatpush.msra.mxu0 0.0
    %1155 = vmatpush.msra.mxu0 0.0
    %1156 = vmatpush.msra.mxu0 0.0
    %1157 = vmatpush.msra.mxu0 0.0
    %1158 = vmatpush.msra.mxu0 0.0
    %1159 = vmatpush.msra.mxu0 0.0
    %1160 = vmatpush.msra.mxu0 0.0
    %1161 = vmatpush.msra.mxu0 %v1138
    %1162 = vmatpush.msra.mxu0 %v1137
    %1163 = vmatmul.f32.gmra.mxu0 %v1139
    %v1164 = vpop.f32.mrf.mxu0
    %v1165 = vadd.f32 0.0, %v1164
    %1166 = vmatmul.f32.gmra.mxu0 %v1141
    %v1167 = vpop.f32.mrf.mxu0
    %v1168 = vadd.f32 0.0, %v1167
    %1169 = vmatmul.f32.gmra.mxu0 %v1143
    %v1170 = vpop.f32.mrf.mxu0
    %v1171 = vadd.f32 0.0, %v1170
    %1172 = vmatmul.f32.gmra.mxu0 %v1145
    %v1173 = vpop.f32.mrf.mxu0
    %v1174 = vadd.f32 0.0, %v1173
    %1175 = vdwg.mxu0
    %v1176 = vadd.f32 %v1125, %v1165
    %v1177 = vadd.f32 %v1128, %v1168
    %v1178 = vadd.f32 %v1131, %v1171
    %v1179 = vadd.f32 %v1134, %v1174
    %v1180 = vrot.slane %v1033, 2
    %v1181 = vrot.slane %v1034, 2
    %v1182 = vsel %vm418, %v1180, %v1181
    %v1183 = vsel %vm418, %v1181, %v422
    %v1184 = vrot.slane %v1035, 2
    %v1185 = vrot.slane %v1036, 2
    %v1186 = vsel %vm418, %v1184, %v1185
    %v1187 = vsel %vm418, %v1185, %v422
    %s1188 = scalar_lea.vmem [#allocation13], 48
    %v1189 = vld [vmem:[%s1188] sm:$0xff]
    %v1190 = vld [vmem:[%s1188 + $0x8] sm:$0xff]
    %v1191 = vsel %vm508, %v1182, 0
    %v1193 = vsel %vm508, %v1183, 0
    %v1195 = vsel %vm508, %v1186, 0
    %v1197 = vsel %vm508, %v1187, 0
    %1199 = vmatpush.msra.mxu0 0.0
    %1200 = vmatpush.msra.mxu0 0.0
    %1201 = vmatpush.msra.mxu0 0.0
    %1202 = vmatpush.msra.mxu0 0.0
    %1203 = vmatpush.msra.mxu0 0.0
    %1204 = vmatpush.msra.mxu0 0.0
    %1205 = vmatpush.msra.mxu0 0.0
    %1206 = vmatpush.msra.mxu0 0.0
    %1207 = vmatpush.msra.mxu0 0.0
    %1208 = vmatpush.msra.mxu0 0.0
    %1209 = vmatpush.msra.mxu0 0.0
    %1210 = vmatpush.msra.mxu0 0.0
    %1211 = vmatpush.msra.mxu0 0.0
    %1212 = vmatpush.msra.mxu0 0.0
    %1213 = vmatpush.msra.mxu0 %v1190
    %1214 = vmatpush.msra.mxu0 %v1189
    %1215 = vmatmul.f32.gmra.mxu0 %v1191
    %v1216 = vpop.f32.mrf.mxu0
    %v1217 = vadd.f32 0.0, %v1216
    %1218 = vmatmul.f32.gmra.mxu0 %v1193
    %v1219 = vpop.f32.mrf.mxu0
    %v1220 = vadd.f32 0.0, %v1219
    %1221 = vmatmul.f32.gmra.mxu0 %v1195
    %v1222 = vpop.f32.mrf.mxu0
    %v1223 = vadd.f32 0.0, %v1222
    %1224 = vmatmul.f32.gmra.mxu0 %v1197
    %v1225 = vpop.f32.mrf.mxu0
    %v1226 = vadd.f32 0.0, %v1225
    %1227 = vdwg.mxu0
    %v1228 = vadd.f32 %v1176, %v1217
    %v1229 = vadd.f32 %v1177, %v1220
    %v1230 = vadd.f32 %v1178, %v1223
    %v1231 = vadd.f32 %v1179, %v1226
    %v1232 = vsel %vm798, %v1041, %v799
    %v1233 = vsel %vm798, %v1047, %v799
    %s1234 = scalar_lea.vmem [#allocation13], 64
    %v1235 = vld [vmem:[%s1234] sm:$0xff]
    %v1236 = vld [vmem:[%s1234 + $0x8] sm:$0xff]
    %v1237 = vsel %vm508, %v1232, 0
    %v1239 = vsel %vm508, %v1233, 0
    %1241 = vmatpush.msra.mxu0 0.0
    %1242 = vmatpush.msra.mxu0 0.0
    %1243 = vmatpush.msra.mxu0 0.0
    %1244 = vmatpush.msra.mxu0 0.0
    %1245 = vmatpush.msra.mxu0 0.0
    %1246 = vmatpush.msra.mxu0 0.0
    %1247 = vmatpush.msra.mxu0 0.0
    %1248 = vmatpush.msra.mxu0 0.0
    %1249 = vmatpush.msra.mxu0 0.0
    %1250 = vmatpush.msra.mxu0 0.0
    %1251 = vmatpush.msra.mxu0 0.0
    %1252 = vmatpush.msra.mxu0 0.0
    %1253 = vmatpush.msra.mxu0 0.0
    %1254 = vmatpush.msra.mxu0 0.0
    %1255 = vmatpush.msra.mxu0 %v1236
    %1256 = vmatpush.msra.mxu0 %v1235
    %1257 = vmatmul.f32.gmra.mxu0 %v1101
    %v1258 = vpop.f32.mrf.mxu0
    %v1259 = vadd.f32 0.0, %v1258
    %1260 = vmatmul.f32.gmra.mxu0 %v1237
    %v1261 = vpop.f32.mrf.mxu0
    %v1262 = vadd.f32 0.0, %v1261
    %1263 = vmatmul.f32.gmra.mxu0 %v1105
    %v1264 = vpop.f32.mrf.mxu0
    %v1265 = vadd.f32 0.0, %v1264
    %1266 = vmatmul.f32.gmra.mxu0 %v1239
    %v1267 = vpop.f32.mrf.mxu0
    %v1268 = vadd.f32 0.0, %v1267
    %1269 = vdwg.mxu0
    %v1270 = vadd.f32 %v1228, %v1259
    %v1271 = vadd.f32 %v1229, %v1262
    %v1272 = vadd.f32 %v1230, %v1265
    %v1273 = vadd.f32 %v1231, %v1268
    %v1274 = vld [vmem:[%s10] sm:$0x1]
    %v1276 = vperm.slane %v1274, 0
    %v1278 = vadd.f32 %v1270, %v1276
    %v1279 = vadd.f32 %v1271, %v1276
    %v1280 = vadd.f32 %v1272, %v1276
    %v1281 = vadd.f32 %v1273, %v1276
    %v1282 = vmax.f32 %v1278, 0.0
    %v1283 = vmax.f32 %v1279, 0.0
    %v1284 = vmax.f32 %v1280, 0.0
    %v1285 = vmax.f32 %v1281, 0.0
    %v1286 = vadd.f32 %v1282, %v787
    %v1287 = vadd.f32 %v1283, %v790
    %v1288 = vadd.f32 %v1284, %v793
    %v1289 = vadd.f32 %v1285, %v796
    %v1290 = vmax.f32 %v1286, 0.0
    %v1291 = vmax.f32 %v1287, 0.0
    %v1292 = vmax.f32 %v1288, 0.0
    %v1293 = vmax.f32 %v1289, 0.0
    %v1294 = vld [vmem:[#allocation15] sm:$0xff]
    %v1295 = vld [vmem:[#allocation15 + $0x8] sm:$0xff]
    %v1296 = vld [vmem:[%s14] sm:$0x1]
    %v1298 = vperm.slane %v1296, 0
    %v1301 = vsel %vm508, %v1290, 0
    %v1304 = vsel %vm508, %v1291, 0
    %v1307 = vsel %vm508, %v1292, 0
    %v1310 = vsel %vm508, %v1293, 0
    %1312 = vmatpush.msra.mxu0 0.0
    %1313 = vmatpush.msra.mxu0 0.0
    %1314 = vmatpush.msra.mxu0 0.0
    %1315 = vmatpush.msra.mxu0 0.0
    %1316 = vmatpush.msra.mxu0 0.0
    %1317 = vmatpush.msra.mxu0 0.0
    %1318 = vmatpush.msra.mxu0 0.0
    %1319 = vmatpush.msra.mxu0 0.0
    %1320 = vmatpush.msra.mxu0 0.0
    %1321 = vmatpush.msra.mxu0 0.0
    %1322 = vmatpush.msra.mxu0 0.0
    %1323 = vmatpush.msra.mxu0 0.0
    %1324 = vmatpush.msra.mxu0 0.0
    %1325 = vmatpush.msra.mxu0 0.0
    %1326 = vmatpush.msra.mxu0 %v1295
    %1327 = vmatpush.msra.mxu0 %v1294
    %1328 = vmatmul.f32.gmra.mxu0 %v1301
    %v1329 = vpop.f32.mrf.mxu0
    %v1330 = vadd.f32 %v1298, %v1329
    %1331 = vmatmul.f32.gmra.mxu0 %v1304
    %v1332 = vpop.f32.mrf.mxu0
    %v1333 = vadd.f32 %v1298, %v1332
    %1334 = vmatmul.f32.gmra.mxu0 %v1307
    %v1335 = vpop.f32.mrf.mxu0
    %v1336 = vadd.f32 %v1298, %v1335
    %1337 = vmatmul.f32.gmra.mxu0 %v1310
    %v1338 = vpop.f32.mrf.mxu0
    %v1339 = vadd.f32 %v1298, %v1338
    %1340 = vdwg.mxu0
    %vm1341 = vcmask 97280
    %1342 = vst.msk [vmem:[%s15] sm:$0xff] %vm1341, %v1330
    %1343 = vst.msk [vmem:[%s15 + $0x8] sm:$0xff] %vm1341, %v1333
    %s1344 = scalar_lea.vmem %s15, 16
    %1345 = vst.msk [vmem:[%s1344] sm:$0xff] %vm1341, %v1336
    %1346 = vst.msk [vmem:[%s1344 + $0x8] sm:$0xff] %vm1341, %v1339
    // Predicated region
    $region98: #{tpu_custom_call.1} parent=1 // pred_check
      _
    $region99: #{tpu_custom_call.1} parent=1 // pred_check_branch
      %1348 = sbr.rel (0) target = $region101
    $region100: #{tpu_custom_call.1} parent=1 // pred_region
      _
    $region101: #{tpu_custom_call.1} parent=1 // pred_fallthru
      _
    // Predicated region
    $region102: #{tpu_custom_call.1} parent=1 // pred_check
      _
    $region103: #{tpu_custom_call.1} parent=1 // pred_check_branch
      %1350 = sbr.rel (0) target = $region105
    $region104: #{tpu_custom_call.1} parent=1 // pred_region
      _
    $region105: #{tpu_custom_call.1} parent=1 // pred_fallthru
      _
    %1351 = vsyncpa [#allocation3], 1
    %1352 = vsyncpa [#allocation5], 1
    %1353 = vsyncpa [#allocation8], 1
    %1354 = vsyncpa [#allocation11], 1
    %1355 = vsyncpa [#allocation14], 1

</llo_original>
